<compile_context>
chip_gen: v5e
topology: v5e:2x2
jax: 0.10.0
libtpu: 0.0.40
codegen_flags: <defaults>
</compile_context>

<pallas_src>
import functools
import numpy as np
import jax
import jax.numpy as jnp
from jax.experimental import pallas as pl
from jax.experimental.pallas import tpu as pltpu


def _ru(x, m):
    return (x + m - 1) // m * m


def _pick_tile(extent, cap, mult):
    """Split `extent` into equal-ish tiles of at most `cap`, each a multiple of `mult`."""
    n = max(1, -(-extent // cap))
    t = _ru(-(-extent // n), mult)
    return t, t * n          # (tile, padded extent = tile * n_tiles)


def _mxu_tile(d):
    """Largest MXU-friendly tile (<=512) that divides the (padded) extent."""
    for t in (512, 256, 128):
        if d % t == 0:
            return t
    return d                 # d < 128: use the full extent (full-dim block is legal)


def _weight_spec(tk, tn, multibuffer):
    """Weight BlockSpec; 3-deep buffered when the matmul M is tiny."""
    index_map = lambda i, j, k: (k, j)
    if multibuffer and hasattr(pl, "Buffered"):
        try:
            return pl.BlockSpec((tk, tn), index_map, pipeline_mode=pl.Buffered(3))
        except TypeError:
            pass
    return pl.BlockSpec((tk, tn), index_map)


# ----------------------------- matmul kernel --------------------------------

def _matmul_kernel(*refs, relu, has_res):
    if has_res:
        a_ref, w_ref, b_ref, r_ref, o_ref, acc_ref = refs
    else:
        a_ref, w_ref, b_ref, o_ref, acc_ref = refs
    k = pl.program_id(2)

    @pl.when(k == 0)
    def _():
        acc_ref[...] = jnp.broadcast_to(b_ref[...], acc_ref.shape)

    acc_ref[...] += jnp.dot(a_ref[...], w_ref[...],
                            preferred_element_type=jnp.float32)

    @pl.when(k == pl.num_programs(2) - 1)
    def _():
        r = acc_ref[...]
        if has_res:
            r = r + r_ref[...].astype(jnp.float32)
        if relu:
            r = jnp.maximum(r, 0.0)
        o_ref[...] = r.astype(o_ref.dtype)


def pallas_linear(a, p, relu=False, residual=None, out_dtype=jnp.bfloat16):
    """out = a @ W + b [+ residual] [ReLU].  Weights in `p` are pre-padded/cast."""
    M, K = a.shape
    Kp, Np = p["w"].shape
    N = p["n"]
    cdt = p["w"].dtype                                  # bf16 backbone / f32 heads
    mult = 16 if np.dtype(out_dtype).itemsize == 2 else 8
    tm, Mp = _pick_tile(M, 512, mult)
    tk = _mxu_tile(Kp)
    tn = _mxu_tile(Np)

    a = a.astype(cdt)
    if (Mp, Kp) != (M, K):
        a = jnp.pad(a, ((0, Mp - M), (0, Kp - K)))

    # Deep-buffer streamed weights when M is tiny (per-step compute can't hide
    # a large weight DMA at the default pipeline depth of 2).
    multibuffer = (Mp <= 256) and ((Kp // tk) * (Np // tn) >= 3)

    inputs = [a, p["w"], p["b"]]
    in_specs = [
        pl.BlockSpec((tm, tk), lambda i, j, k: (i, k)),
        _weight_spec(tk, tn, multibuffer),
        pl.BlockSpec((1, tn), lambda i, j, k: (0, j)),
    ]
    has_res = residual is not None
    if has_res:
        r = residual.astype(jnp.bfloat16)
        if r.shape != (Mp, Np):
            r = jnp.pad(r, ((0, Mp - r.shape[0]), (0, Np - r.shape[1])))
        inputs.append(r)
        in_specs.append(pl.BlockSpec((tm, tn), lambda i, j, k: (i, j)))

    w_itm = np.dtype(cdt).itemsize
    o_itm = np.dtype(out_dtype).itemsize
    cost = pl.CostEstimate(
        flops=2 * Mp * Kp * Np,
        transcendentals=0,
        bytes_accessed=int(Mp * Kp * w_itm + Kp * Np * w_itm + Np * 4
                           + Mp * Np * o_itm + (Mp * Np * 2 if has_res else 0)))

    out = pl.pallas_call(
        functools.partial(_matmul_kernel, relu=relu, has_res=has_res),
        out_shape=jax.ShapeDtypeStruct((Mp, Np), out_dtype),
        grid=(Mp // tm, Np // tn, Kp // tk),
        in_specs=in_specs,
        out_specs=pl.BlockSpec((tm, tn), lambda i, j, k: (i, j)),
        scratch_shapes=[pltpu.VMEM((tm, tn), jnp.float32)],
        compiler_params=pltpu.CompilerParams(
            dimension_semantics=("parallel", "parallel", "arbitrary")),
        cost_estimate=cost,
    )(*inputs)
    if (Mp, Np) != (M, N):
        out = out[:M, :N]
    return out


# ------------------------- fused stride-1 3x3 conv --------------------------

def _conv3x3_kernel(x_ref, w_ref, b_ref, o_ref, acc_ref, *, Wp, tm, relu, tiled_m):
    acc_ref[...] = jnp.broadcast_to(b_ref[...], acc_ref.shape)
    if tiled_m:
        base = pl.multiple_of(pl.program_id(2) * tm, 8)
    else:
        base = 0
    for tap in range(9):
        dy, dx = tap // 3, tap % 3
        off = dy * Wp + dx
        a = x_ref[0, pl.ds(base + off, tm), :]          # (tm, Cin) bf16 slab
        acc_ref[...] += jnp.dot(a, w_ref[tap],
                                preferred_element_type=jnp.float32)
    r = acc_ref[...]
    if relu:
        r = jnp.maximum(r, 0.0)
    o_ref[0] = r.astype(o_ref.dtype)


def conv3x3_s1(x, p, relu=True):
    """3x3, stride 1, padding 1 conv via 9-tap accumulation over a flattened
    padded sample kept in VMEM (no 9x im2col materialization)."""
    B, H, W, Cin = x.shape
    Cout = p["cout"]
    Hp, Wp = H + 2, W + 2
    Ho, Wo = H, W
    OW = Ho * Wp                                   # "wide" output rows per sample
    tm, OWp = _pick_tile(OW, 512, 16)
    n_m = OWp // tm
    tn = _mxu_tile(Cout)

    # Slack so the last tap slab (offset 2*Wp+2) of the last m-tile stays in bounds.
    need = max(Hp * Wp, OWp + 2 * Wp + 2)
    pad_rows = -(-(need - Hp * Wp) // Wp) if need > Hp * Wp else 0
    xlen = (Hp + pad_rows) * Wp

    # Single pad producing the flattened, spatially padded (+ slack) layout:
    #   (B,H,W,Cin) -> (B,H,W*Cin) --pad--> (B, Hp+pad_rows, Wp*Cin) -> (B, xlen, Cin)
    xf = x.astype(jnp.bfloat16).reshape(B, H, W * Cin)
    xf = jnp.pad(xf, ((0, 0), (1, 1 + pad_rows), (Cin, Cin)))
    xf = xf.reshape(B, xlen, Cin)

    cost = pl.CostEstimate(
        flops=2 * B * OWp * 9 * Cin * Cout,
        transcendentals=0,
        bytes_accessed=int(xf.size * 2 + p["w9"].size * 2 + p["b"].size * 4
                           + B * OWp * Cout * 2))

    out = pl.pallas_call(
        functools.partial(_conv3x3_kernel, Wp=Wp, tm=tm, relu=relu,
                          tiled_m=(n_m > 1)),
        out_shape=jax.ShapeDtypeStruct((B, OWp, Cout), jnp.bfloat16),
        grid=(B, Cout // tn, n_m),
        in_specs=[
            pl.BlockSpec((1, xlen, Cin), lambda b, j, m: (b, 0, 0)),
            pl.BlockSpec((9, Cin, tn), lambda b, j, m: (0, 0, j)),
            pl.BlockSpec((1, tn), lambda b, j, m: (0, j)),
        ],
        out_specs=pl.BlockSpec((1, tm, tn), lambda b, j, m: (b, m, j)),
        scratch_shapes=[pltpu.VMEM((tm, tn), jnp.float32)],
        compiler_params=pltpu.CompilerParams(
            dimension_semantics=("parallel", "parallel", "parallel")),
        cost_estimate=cost,
    )(xf, p["w9"], p["b"])
    # One fused crop: wide rows -> (B, Ho, Wo, Cout).
    out = out[:, :OW, :].reshape(B, Ho, Wp, Cout)[:, :, :Wo, :]
    return out


# --------------------- im2col conv (conv1 & stride-2 3x3) -------------------

def conv_im2col(x, p, kh, kw, stride, padding, relu):
    B, H, W, Cin = x.shape
    Ho = (H + 2 * padding - kh) // stride + 1
    Wo = (W + 2 * padding - kw) // stride + 1
    x = x.astype(jnp.bfloat16)
    xpd = jnp.pad(x, ((0, 0), (padding, padding), (padding, padding), (0, 0)))
    cols = [xpd[:, dy:dy + Ho * stride:stride, dx:dx + Wo * stride:stride, :]
            for dy in range(kh) for dx in range(kw)]
    a = jnp.stack(cols, axis=3).reshape(B * Ho * Wo, kh * kw * Cin)
    out = pallas_linear(a, p, relu=relu)
    return out.reshape(B, Ho, Wo, p["n"])


# ------------------------------- pooling ------------------------------------

def _max9_kernel(x_ref, o_ref):
    r = x_ref[0]
    for t in range(1, 9):
        r = jnp.maximum(r, x_ref[t])
    o_ref[...] = r


def maxpool_3x3_s2_p1(x):
    B, H, W, C = x.shape
    Ho = (H + 2 - 3) // 2 + 1
    Wo = (W + 2 - 3) // 2 + 1
    pad_val = float(jnp.finfo(x.dtype).min)
    xpd = jnp.pad(x, ((0, 0), (1, 1), (1, 1), (0, 0)), constant_values=pad_val)
    cols = [xpd[:, dy:dy + Ho * 2:2, dx:dx + Wo * 2:2, :]
            for dy in range(3) for dx in range(3)]
    stacked = jnp.stack(cols, axis=0).reshape(9, B * Ho * Wo, C)
    M = B * Ho * Wo
    tm, Mp = _pick_tile(M, 512, 16)
    if Mp != M:
        stacked = jnp.pad(stacked, ((0, 0), (0, Mp - M), (0, 0)))
    out = pl.pallas_call(
        _max9_kernel,
        out_shape=jax.ShapeDtypeStruct((Mp, C), x.dtype),
        grid=(Mp // tm,),
        in_specs=[pl.BlockSpec((9, tm, C), lambda i: (0, i, 0))],
        out_specs=pl.BlockSpec((tm, C), lambda i: (i, 0)),
        compiler_params=pltpu.CompilerParams(dimension_semantics=("parallel",)),
    )(stacked)
    return out[:M].reshape(B, Ho, Wo, C)


def _avgpool_kernel(x_ref, o_ref):
    o_ref[...] = jnp.mean(x_ref[...].astype(jnp.float32), axis=1).astype(o_ref.dtype)


def global_avgpool(x):
    B, H, W, C = x.shape
    Cp = _ru(C, 128)
    xr = x.reshape(B, H * W, C)
    if Cp != C:
        xr = jnp.pad(xr, ((0, 0), (0, 0), (0, Cp - C)))
    tn = _mxu_tile(Cp)
    out = pl.pallas_call(
        _avgpool_kernel,
        out_shape=jax.ShapeDtypeStruct((B, Cp), jnp.float32),
        grid=(Cp // tn,),
        in_specs=[pl.BlockSpec((B, H * W, tn), lambda j: (0, 0, j))],
        out_specs=pl.BlockSpec((B, tn), lambda j: (0, j)),
        compiler_params=pltpu.CompilerParams(dimension_semantics=("parallel",)),
    )(xr)
    return out[:, :C]


# ----------------------------- parameter init -------------------------------

def init_conv_bn(key, kh, kw, cin, cout, eps=1e-5):
    """Conv weight + folded (inference-mode) BatchNorm -> effective (w, b)."""
    k1, k2, k3, k4, k5 = jax.random.split(key, 5)
    fan_in = kh * kw * cin
    w = jax.random.normal(k1, (kh, kw, cin, cout), jnp.float32) * np.sqrt(2.0 / fan_in)
    gamma = 1.0 + 0.1 * jax.random.normal(k2, (cout,), jnp.float32)
    beta = 0.1 * jax.random.normal(k3, (cout,), jnp.float32)
    mean = 0.1 * jax.random.normal(k4, (cout,), jnp.float32)
    var = 1.0 + 0.1 * jax.random.uniform(k5, (cout,), jnp.float32)
    scale = gamma / jnp.sqrt(var + eps)
    return w * scale, beta - mean * scale


def init_linear(key, fin, fout):
    k1, k2 = jax.random.split(key)
    bound = 1.0 / np.sqrt(fin)
    w = jax.random.uniform(k1, (fin, fout), jnp.float32, -bound, bound)
    b = jax.random.uniform(k2, (fout,), jnp.float32, -bound, bound)
    return w, b


def _pack_matmul(w2d, b, dtype=jnp.bfloat16):
    """Pre-pad to lane multiples and pre-cast once, at init."""
    K, N = w2d.shape
    Kp, Np = _ru(K, 128), _ru(N, 128)
    wp = jnp.zeros((Kp, Np), dtype).at[:K, :N].set(w2d.astype(dtype))
    bp = jnp.zeros((1, Np), jnp.float32).at[0, :N].set(b)
    return {"w": wp, "b": bp, "k": K, "n": N}


def _pack_conv3x3(w, b):
    _, _, ci, co = w.shape
    w9 = w.reshape(9, ci, co).astype(jnp.bfloat16)     # no channel padding needed
    bp = b.reshape(1, co).astype(jnp.float32)
    return {"w9": w9, "b": bp, "cin": ci, "cout": co}


def init_unified_model(key):
    # TODO(synk): pretrained ImageNet weights are replaced with random BN-folded
    # weights (no file I/O allowed); the architecture / forward math is identical.
    ki = iter(jax.random.split(key, 64))
    w, b = init_conv_bn(next(ki), 7, 7, 3, 64)
    params = {"conv1": _pack_matmul(w.reshape(7 * 7 * 3, 64), b)}
    layers = []
    cin = 64
    # ResNet50 stage config: (bottleneck width, #blocks, first-block stride)
    for width, nblocks, first_stride in [(64, 3, 1), (128, 4, 2), (256, 6, 2), (512, 3, 2)]:
        blocks = []
        for i in range(nblocks):
            s = first_stride if i == 0 else 1
            bk = jax.random.split(next(ki), 4)
            p = {"stride": s}
            w1, b1 = init_conv_bn(bk[0], 1, 1, cin, width)
            p["c1"] = _pack_matmul(w1.reshape(cin, width), b1)
            w2, b2 = init_conv_bn(bk[1], 3, 3, width, width)
            if s == 1:
                p["c2"] = _pack_conv3x3(w2, b2)
            else:
                p["c2"] = _pack_matmul(w2.reshape(9 * width, width), b2)
            w3, b3 = init_conv_bn(bk[2], 1, 1, width, width * 4)
            p["c3"] = _pack_matmul(w3.reshape(width, width * 4), b3)
            if s != 1 or cin != width * 4:
                wd, bd = init_conv_bn(bk[3], 1, 1, cin, width * 4)
                p["down"] = _pack_matmul(wd.reshape(cin, width * 4), bd)
            blocks.append(p)
            cin = width * 4
        layers.append(blocks)
    params["layers"] = layers
    # Heads in f32 for closer agreement with an f32 reference (tiny matmuls).
    params["body_fc"] = _pack_matmul(*init_linear(next(ki), 7, 128), dtype=jnp.float32)
    params["classifier"] = _pack_matmul(*init_linear(next(ki), 2048 + 128, 2),
                                        dtype=jnp.float32)
    return params


# ----------------------------- forward pass ---------------------------------

def bottleneck_forward(x, p):
    s = p["stride"]
    B, H, W, Cin = x.shape
    width = p["c1"]["n"]
    c4 = p["c3"]["n"]

    # identity / downsample branch (rows ordered (b, y, x) to match main branch)
    if "down" in p:
        xi = x[:, ::s, ::s, :]
        Bi, Hi, Wi, _ = xi.shape
        identity = pallas_linear(xi.reshape(Bi * Hi * Wi, Cin), p["down"])
    else:
        identity = x.reshape(B * H * W, Cin)

    out = pallas_linear(x.reshape(B * H * W, Cin), p["c1"], relu=True)   # 1x1 reduce
    out = out.reshape(B, H, W, width)
    if s == 1:
        out = conv3x3_s1(out, p["c2"], relu=True)                        # fused 3x3
    else:
        out = conv_im2col(out, p["c2"], 3, 3, s, 1, relu=True)           # 3x3 stride 2
    Bo, Ho, Wo, _ = out.shape
    # 1x1 expand with residual add + ReLU fused into the matmul epilogue
    out = pallas_linear(out.reshape(Bo * Ho * Wo, width), p["c3"],
                        relu=True, residual=identity)
    return out.reshape(Bo, Ho, Wo, c4)


def unified_forward(params, x_nchw, body_part):
    x = jnp.transpose(x_nchw, (0, 2, 3, 1)).astype(jnp.bfloat16)   # NCHW -> NHWC
    x = conv_im2col(x, params["conv1"], 7, 7, 2, 3, relu=True)     # conv1 7x7/2 + bn + relu
    x = maxpool_3x3_s2_p1(x)                                       # maxpool 3x3/2
    for blocks in params["layers"]:
        for p in blocks:
            x = bottleneck_forward(x, p)
    feat = global_avgpool(x)                                       # (B, 2048) f32
    body = pallas_linear(body_part, params["body_fc"],
                         out_dtype=jnp.float32)                    # (B, 128) f32
    combined = jnp.concatenate([feat, body], axis=1)               # (B, 2176)
    return pallas_linear(combined, params["classifier"], out_dtype=jnp.float32)


if __name__ == "__main__":
    key = jax.random.PRNGKey(0)
    kp, kx, kb = jax.random.split(key, 3)
    params = init_unified_model(kp)
    # Small ResNet-compatible input: batch=2, 3 channels, 64x64 spatial (NCHW).
    x = jax.random.normal(kx, (2, 3, 64, 64), jnp.float32)
    body_part = jax.random.normal(kb, (2, 7), jnp.float32)
    out = unified_forward(params, x, body_part)
    out = jax.block_until_ready(out)
    assert out.shape == (2, 2)
    assert bool(jnp.all(jnp.isfinite(out)))
    print("KERNEL_OK")
</pallas_src>

<mosaic_0001>
module attributes {stable_mosaic.version = 11 : i64} {
  func.func @_matmul_kernel(%arg0: i32, %arg1: i32, %arg2: i32, %arg3: memref<512x256xbf16, #tpu.memory_space<vmem>>, %arg4: memref<256x128xbf16, #tpu.memory_space<vmem>>, %arg5: memref<1x128xf32, #tpu.memory_space<vmem>>, %arg6: memref<512x128xbf16, #tpu.memory_space<vmem>>, %arg7: memref<512x128xf32, #tpu.memory_space<vmem>>) attributes {dimension_semantics = [#tpu.dimension_semantics<parallel>, #tpu.dimension_semantics<parallel>, #tpu.dimension_semantics<arbitrary>], iteration_bounds = array<i64: 4, 1, 1>, scalar_prefetch = 0 : i64, scratch_operands = 1 : i64, tpu.core_type = #tpu.core_type<tc>, window_params = [{transform_indices = @transform_0, window_bounds = array<i64: 512, 256>}, {transform_indices = @transform_1, window_bounds = array<i64: 256, 128>}, {transform_indices = @transform_2, window_bounds = array<i64: 1, 128>}, {transform_indices = @transform_3, window_bounds = array<i64: 512, 128>}]} {
    %c0_i32 = arith.constant 0 : i32
    %0 = arith.cmpi eq, %arg2, %c0_i32 : i32
    %1 = arith.extui %0 : i1 to i32
    %c0_i32_0 = arith.constant 0 : i32
    %2 = arith.cmpi ne, %1, %c0_i32_0 : i32
    scf.if %2 {
      %c0_10 = arith.constant 0 : index
      %c0_11 = arith.constant 0 : index
      %12 = vector.load %arg5[%c0_10, %c0_11] : memref<1x128xf32, #tpu.memory_space<vmem>>, vector<1x128xf32>
      %13 = vector.shape_cast %12 : vector<1x128xf32> to vector<1x128xf32>
      %14 = vector.broadcast %13 : vector<1x128xf32> to vector<512x128xf32>
      %c0_12 = arith.constant 0 : index
      %c0_13 = arith.constant 0 : index
      %15 = vector.load %arg7[%c0_12, %c0_13] : memref<512x128xf32, #tpu.memory_space<vmem>>, vector<512x128xf32>
      tpu.vector_store %arg7[%c0_12, %c0_13], %14 {strides = array<i32>} : memref<512x128xf32, #tpu.memory_space<vmem>>, vector<512x128xf32>,
    } else {
    }
    %c0 = arith.constant 0 : index
    %c0_1 = arith.constant 0 : index
    %3 = vector.load %arg7[%c0, %c0_1] : memref<512x128xf32, #tpu.memory_space<vmem>>, vector<512x128xf32>
    %c0_2 = arith.constant 0 : index
    %c0_3 = arith.constant 0 : index
    %4 = vector.load %arg3[%c0_2, %c0_3] : memref<512x256xbf16, #tpu.memory_space<vmem>>, vector<512x256xbf16>
    %c0_4 = arith.constant 0 : index
    %c0_5 = arith.constant 0 : index
    %5 = vector.load %arg4[%c0_4, %c0_5] : memref<256x128xbf16, #tpu.memory_space<vmem>>, vector<256x128xbf16>
    %cst = arith.constant dense<0.000000e+00> : vector<512x128xf32>
    %6 = tpu.matmul %4, %5, %cst {dimension_numbers = #tpu.dot_dimension_numbers<[1], [0], [0], [1], [0, 0, 1, 1], [], []>} : vector<512x256xbf16>, vector<256x128xbf16>, vector<512x128xf32> -> vector<512x128xf32>
    %7 = arith.addf %3, %6 : vector<512x128xf32>
    %c0_6 = arith.constant 0 : index
    %c0_7 = arith.constant 0 : index
    %8 = vector.load %arg7[%c0_6, %c0_7] : memref<512x128xf32, #tpu.memory_space<vmem>>, vector<512x128xf32>
    tpu.vector_store %arg7[%c0_6, %c0_7], %7 {strides = array<i32>} : memref<512x128xf32, #tpu.memory_space<vmem>>, vector<512x128xf32>,
    %c0_i32_8 = arith.constant 0 : i32
    %9 = arith.cmpi eq, %arg2, %c0_i32_8 : i32
    %10 = arith.extui %9 : i1 to i32
    %c0_i32_9 = arith.constant 0 : i32
    %11 = arith.cmpi ne, %10, %c0_i32_9 : i32
    scf.if %11 {
      %c0_10 = arith.constant 0 : index
      %c0_11 = arith.constant 0 : index
      %12 = vector.load %arg7[%c0_10, %c0_11] : memref<512x128xf32, #tpu.memory_space<vmem>>, vector<512x128xf32>
      %cst_12 = arith.constant 0.000000e+00 : f32
      %13 = vector.broadcast %cst_12 : f32 to vector<512x128xf32>
      %14 = arith.maximumf %12, %13 : vector<512x128xf32>
      %15 = arith.truncf %14 : vector<512x128xf32> to vector<512x128xbf16>
      %c0_13 = arith.constant 0 : index
      %c0_14 = arith.constant 0 : index
      %16 = vector.load %arg6[%c0_13, %c0_14] : memref<512x128xbf16, #tpu.memory_space<vmem>>, vector<512x128xbf16>
      tpu.vector_store %arg6[%c0_13, %c0_14], %15 {strides = array<i32>} : memref<512x128xbf16, #tpu.memory_space<vmem>>, vector<512x128xbf16>,
    } else {
    }
    return
  }
  func.func @transform_0(%arg0: i32, %arg1: i32, %arg2: i32) -> (i32, i32) {
    %c0_i32 = arith.constant 0 : i32
    return %arg0, %arg2 : i32, i32
  }
  func.func @transform_1(%arg0: i32, %arg1: i32, %arg2: i32) -> (i32, i32) {
    %c0_i32 = arith.constant 0 : i32
    return %arg2, %arg1 : i32, i32
  }
  func.func @transform_2(%arg0: i32, %arg1: i32, %arg2: i32) -> (i32, i32) {
    %c0_i32 = arith.constant 0 : i32
    %c0_i32_0 = arith.constant 0 : i32
    return %c0_i32, %arg1 : i32, i32
  }
  func.func @transform_3(%arg0: i32, %arg1: i32, %arg2: i32) -> (i32, i32) {
    %c0_i32 = arith.constant 0 : i32
    return %arg0, %arg1 : i32, i32
  }
}

</mosaic_0001>

<llo_original>
// kernel: tpu_custom_call.1
$region0: #{tpu_custom_call.1}
  #allocation0 [shape = 'u32[]', space=smem, size = 0x4, offset = 0x4, fixed_abs, tag = 'smem constant byte address 0x4 - core index']
  #allocation1 [shape = 'u32[72,128]{1,0:T(1,128)}', space=vmem, size = 0x9000, scoped, tag = 'internal scratch']
  #allocation2 [shape = 'f32[512,128]{1,0:T(8,128)}', space=vmem, size = 0x40000, scoped, tag = 'scratch operand']
  %s0 = inlined_call_operand.hbm [shape: bf16[2048,256], index: 0, kind: input, shape index: {}]
  %s1 = inlined_call_operand.hbm [shape: bf16[256,128], index: 1, kind: input, shape index: {}]
  %s2 = inlined_call_operand.vmem [shape: f32[1,128], index: 2, kind: input, shape index: {}]
  %s3 = inlined_call_operand.hbm [shape: bf16[2048,128], index: 3, kind: output, shape index: {}]
  %s4 = sld [smem:[#allocation0]]
  $region61: #{tpu_custom_call.1} parent=0
    _
  %s6 = ssub.s32 1, %s4
  %s7 = scalar_select 0, %s6, %s4
  $region1: #{tpu_custom_call.1} parent=0
    #allocation3 [shape = 'u8[524288]{0}', space=vmem, size = 0x80000, scoped, tag = 'input window, operand 0']
    #allocation4 [shape = 's32[2]{0}', space=sflag, size = 0x8, scoped, tag = 'scoped memory for tpu_custom_call.1']
    #allocation5 [shape = 's32[2]{0}', space=sflag, size = 0x8, scoped, tag = 'scoped memory for tpu_custom_call.1']
    #allocation6 [shape = 'u8[65536]{0}', space=vmem, size = 0x10000, scoped, tag = 'input window, operand 1, single buffered']
    #allocation7 [shape = 's32[1]{0}', space=sflag, size = 0x4, scoped, tag = 'scoped memory for tpu_custom_call.1']
    #allocation8 [shape = 'u8[262144]{0}', space=vmem, size = 0x40000, scoped, tag = 'output window, operand 0']
    %8 = vsyncpa [#allocation4], 0
    %s9 = scalar_lea.sflag [#allocation4], 1
    %10 = vsyncpa %s9, 0
    %11 = vsyncpa [#allocation7], 0
    %12 = vsyncpa [#allocation5], 0
    %s13 = scalar_lea.sflag [#allocation5], 1
    %14 = vsyncpa %s13, 0
    loop: start=0, step=1, limit=6
    $region2: #{tpu_custom_call.1} parent=1 // loop_pre_header
      _
    $region3: #{tpu_custom_call.1} parent=1 // loop_header
      %s16 = sphi 0, %s20
      %p17 = scmp.ge.s32.totalorder %s16, 6
      %s23 = sphi 0, %s42
      %s24 = sphi 0, %s38
      %s25 = sphi 0, %s34
      %s26 = sphi 0, %s23
      %s27 = sphi 0, %s24
      %s28 = sphi 0, %s25
      %s29 = sphi 0, %s26
      %s30 = sphi 0, %s27
      %s31 = sphi 0, %s28
      %s47 = sphi 0, %s49
      %s50 = sphi 0, %s47
      %s51 = sphi 0, %s50
      %s67 = sphi 0, %s51
      %s75 = sphi 0, %s77
      %s78 = sphi 0, %s75
      %s79 = sphi 0, %s78
      %s95 = sphi 0, %s79
      %s101 = sphi 0, %s103
      %s104 = sphi 0, %s101
      %s105 = sphi 0, %s104
      %s121 = sphi 0, %s105
      %s129 = sphi 0, %s131
      %s132 = sphi 0, %s129
      %s133 = sphi 0, %s132
      %s149 = sphi 0, %s133
    $region4: #{tpu_custom_call.1} parent=1 // loop_header_branch
      %19 = sbr.rel (%p17) target = $region8
    $region5: #{tpu_custom_call.1} parent=1 // loop_body
      %s21 = ssub.s32 %s16, 1
      %s22 = ssub.s32 %s16, 2
      %s32 = sadd.s32 1, %s25
      %p33 = scmp.ge.s32.totalorder %s32, 1
      %s34 = scalar_select %p33, 0, %s32
      %s35 = sadd.s32 1, %s24
      %s36 = scalar_select %p33, %s35, %s24
      %p37 = scmp.ge.s32.totalorder %s36, 1
      %s38 = scalar_select %p37, 0, %s36
      %s39 = sadd.s32 1, %s23
      %s40 = scalar_select %p37, %s39, %s23
      %p41 = scmp.ge.s32.totalorder %s40, 4
      %s42 = scalar_select %p41, 0, %s40
      %s43 = ssub.s32 %s23, %s42
      %s44 = ssub.s32 %s25, %s34
      %s45 = sor.u32 %s43, %s44
      %p46 = scmp.eq.s32.totalorder %s45, 0
      %s48 = sadd.s32 %s47, 1
      %s49 = scalar_select %p46, %s47, %s48
      %p52 = pneg %p46
      %p53 = scmp.eq.s32.totalorder %s16, 3
      %p54 = por %p52, %p53
      %p55 = scmp.ne.s32.totalorder %s47, %s50
      %p56 = scmp.eq.s32.totalorder %s16, 0
      %p57 = por %p55, %p56
      %p58 = scmp.ne.s32.totalorder %s47, %s50
      %p59 = scmp.eq.s32.totalorder %s21, 3
      %p60 = por %p58, %p59
      %p61 = scmp.ne.s32.totalorder %s50, %s51
      %p62 = scmp.eq.s32.totalorder %s21, 0
      %p63 = por %p61, %p62
      %p64 = scmp.ne.s32.totalorder %s50, %s51
      %p65 = scmp.eq.s32.totalorder %s22, 3
      %p66 = por %p64, %p65
      %p68 = scmp.ne.s32.totalorder %s51, %s67
      %p69 = scmp.eq.s32.totalorder %s22, 0
      %p70 = por %p68, %p69
      %s71 = ssub.s32 %s25, %s34
      %s72 = ssub.s32 %s24, %s38
      %s73 = sor.u32 %s71, %s72
      %p74 = scmp.eq.s32.totalorder %s73, 0
      %s76 = sadd.s32 %s75, 1
      %s77 = scalar_select %p74, %s75, %s76
      %p80 = pneg %p74
      %p81 = scmp.eq.s32.totalorder %s16, 3
      %p82 = por %p80, %p81
      %p83 = scmp.ne.s32.totalorder %s75, %s78
      %p84 = scmp.eq.s32.totalorder %s16, 0
      %p85 = por %p83, %p84
      %p86 = scmp.ne.s32.totalorder %s75, %s78
      %p87 = scmp.eq.s32.totalorder %s21, 3
      %p88 = por %p86, %p87
      %p89 = scmp.ne.s32.totalorder %s78, %s79
      %p90 = scmp.eq.s32.totalorder %s21, 0
      %p91 = por %p89, %p90
      %p92 = scmp.ne.s32.totalorder %s78, %s79
      %p93 = scmp.eq.s32.totalorder %s22, 3
      %p94 = por %p92, %p93
      %p96 = scmp.ne.s32.totalorder %s79, %s95
      %p97 = scmp.eq.s32.totalorder %s22, 0
      %p98 = por %p96, %p97
      %s99 = ssub.s32 %s24, %s38
      %p100 = scmp.eq.s32.totalorder %s99, 0
      %s102 = sadd.s32 %s101, 1
      %s103 = scalar_select %p100, %s101, %s102
      %p106 = pneg %p100
      %p107 = scmp.eq.s32.totalorder %s16, 3
      %p108 = por %p106, %p107
      %p109 = scmp.ne.s32.totalorder %s101, %s104
      %p110 = scmp.eq.s32.totalorder %s16, 0
      %p111 = por %p109, %p110
      %p112 = scmp.ne.s32.totalorder %s101, %s104
      %p113 = scmp.eq.s32.totalorder %s21, 3
      %p114 = por %p112, %p113
      %p115 = scmp.ne.s32.totalorder %s104, %s105
      %p116 = scmp.eq.s32.totalorder %s21, 0
      %p117 = por %p115, %p116
      %p118 = scmp.ne.s32.totalorder %s104, %s105
      %p119 = scmp.eq.s32.totalorder %s22, 3
      %p120 = por %p118, %p119
      %p122 = scmp.ne.s32.totalorder %s105, %s121
      %p123 = scmp.eq.s32.totalorder %s22, 0
      %p124 = por %p122, %p123
      %s125 = ssub.s32 %s23, %s42
      %s126 = ssub.s32 %s24, %s38
      %s127 = sor.u32 %s125, %s126
      %p128 = scmp.eq.s32.totalorder %s127, 0
      %s130 = sadd.s32 %s129, 1
      %s131 = scalar_select %p128, %s129, %s130
      %p134 = pneg %p128
      %p135 = scmp.eq.s32.totalorder %s16, 3
      %p136 = por %p134, %p135
      %p137 = scmp.ne.s32.totalorder %s129, %s132
      %p138 = scmp.eq.s32.totalorder %s16, 0
      %p139 = por %p137, %p138
      %p140 = scmp.ne.s32.totalorder %s129, %s132
      %p141 = scmp.eq.s32.totalorder %s21, 3
      %p142 = por %p140, %p141
      %p143 = scmp.ne.s32.totalorder %s132, %s133
      %p144 = scmp.eq.s32.totalorder %s21, 0
      %p145 = por %p143, %p144
      %p146 = scmp.ne.s32.totalorder %s132, %s133
      %p147 = scmp.eq.s32.totalorder %s22, 3
      %p148 = por %p146, %p147
      %p150 = scmp.ne.s32.totalorder %s133, %s149
      %p151 = scmp.eq.s32.totalorder %s22, 0
      %p152 = por %p150, %p151
      %p153 = scmp.le.s32.totalorder 1, %s16
      %p154 = scmp.lt.s32.totalorder %s16, 5
      %p155 = pnand %p153, %p154
      %p156 = pneg %p155
      // Predicated region
      $region9: #{tpu_custom_call.1} parent=5 // pred_check
        _
      $region10: #{tpu_custom_call.1} parent=5 // pred_check_branch
        %158 = sbr.rel (%p155) target = $region12
      $region11: #{tpu_custom_call.1} parent=5 // pred_region
        %s159 = ssub.s32 %s16, 1
        // Predicated region
        $region13: #{tpu_custom_call.1} parent=11 // pred_check
          %p160 = pneg %p91
        $region14: #{tpu_custom_call.1} parent=11 // pred_check_branch
          %162 = sbr.rel (%p160) target = $region16
        $region15: #{tpu_custom_call.1} parent=11 // pred_region
          %s163 = smul.u32 32, %s28
          %165 = vsyncadd [#allocation7], 0
          %s166 = sadd.s32 %s27, %s163
          %s167 = smul.addr %s166, 4
          %s168 = scalar_lea.hbm %s1, %s167
          %s169 = sshll.u32 %s168, 4
          %s170 = int_to_ptr.hbm [resolvable:$true] %s169
          %s171 = sshll.u32 [#allocation6], 4
          %s172 = int_to_ptr.vmem [resolvable:$true] %s171
          %177 = dma.hbm_to_vmem [thread:$0]  %s170, 2048, %s172, [#allocation7], 64, 64, 4
        $region16: #{tpu_custom_call.1} parent=11 // pred_fallthru
          _
        // Predicated region
        $region17: #{tpu_custom_call.1} parent=11 // pred_check
          %p178 = pneg %p117
        $region18: #{tpu_custom_call.1} parent=11 // pred_check_branch
          %180 = sbr.rel (%p178) target = $region20
        $region19: #{tpu_custom_call.1} parent=11 // pred_region
          %p181 = scmp.lt.s32.totalorder %s27, 0
          %s182 = scalar_select %p181, %s27, 0
          %s183 = scalar_lea.vmem %s2, %s182
        $region20: #{tpu_custom_call.1} parent=11 // pred_fallthru
          _
      $region12: #{tpu_custom_call.1} parent=5 // pred_fallthru
        _
      %p184 = scmp.lt.s32.totalorder %s16, 4
      // Predicated region
      $region21: #{tpu_custom_call.1} parent=5 // pred_check
        %p185 = pneg %p184
      $region22: #{tpu_custom_call.1} parent=5 // pred_check_branch
        %187 = sbr.rel (%p185) target = $region24
      $region23: #{tpu_custom_call.1} parent=5 // pred_region
        // Predicated region
        $region25: #{tpu_custom_call.1} parent=23 // pred_check
          %p188 = pneg %p57
        $region26: #{tpu_custom_call.1} parent=23 // pred_check_branch
          %190 = sbr.rel (%p188) target = $region28
        $region27: #{tpu_custom_call.1} parent=23 // pred_region
          %s191 = sand.u32 %s47, 1
          %s192 = scalar_lea.sflag [#allocation4], %s191
          %s193 = sand.u32 %s47, 1
          %s194 = smul.addr %s193, 512
          %s195 = scalar_lea.vmem [#allocation3], %s194
          %s196 = smul.u32 64, %s23
          %s197 = smul.u32 2, %s25
          %199 = vsyncadd %s192, 0
          %s200 = smul.addr %s196, 2
          %s201 = sadd.s32 %s197, %s200
          %s202 = smul.addr %s201, 4
          %s203 = scalar_lea.hbm %s0, %s202
          %s204 = sshll.u32 %s203, 4
          %s205 = int_to_ptr.hbm [resolvable:$true] %s204
          %s206 = sshll.u32 %s195, 4
          %s207 = int_to_ptr.vmem [resolvable:$true] %s206
          %212 = dma.hbm_to_vmem [thread:$0]  %s205, 8192, %s207, %s192, 128, 128, 8
        $region28: #{tpu_custom_call.1} parent=23 // pred_fallthru
          _
      $region24: #{tpu_custom_call.1} parent=5 // pred_fallthru
        _
      %p213 = scmp.le.s32.totalorder 1, %s16
      %p214 = scmp.lt.s32.totalorder %s16, 5
      %p215 = pnand %p213, %p214
      %p216 = pneg %p215
      // Predicated region
      $region29: #{tpu_custom_call.1} parent=5 // pred_check
        _
      $region30: #{tpu_custom_call.1} parent=5 // pred_check_branch
        %218 = sbr.rel (%p215) target = $region32
      $region31: #{tpu_custom_call.1} parent=5 // pred_region
        %s219 = ssub.s32 %s16, 1
        %s220 = sand.u32 %s50, 1
        %s221 = scalar_lea.sflag [#allocation4], %s220
        %s222 = sand.u32 %s50, 1
        %s223 = smul.addr %s222, 512
        %s224 = scalar_lea.vmem [#allocation3], %s223
        // Predicated region
        $region33: #{tpu_custom_call.1} parent=31 // pred_check
          %p225 = pneg %p63
        $region34: #{tpu_custom_call.1} parent=31 // pred_check_branch
          %227 = sbr.rel (%p225) target = $region36
        $region35: #{tpu_custom_call.1} parent=31 // pred_region
          %229 = dma.done %s221, 8192
        $region36: #{tpu_custom_call.1} parent=31 // pred_fallthru
          _
        // Predicated region
        $region37: #{tpu_custom_call.1} parent=31 // pred_check
          %p230 = pneg %p91
        $region38: #{tpu_custom_call.1} parent=31 // pred_check_branch
          %232 = sbr.rel (%p230) target = $region40
        $region39: #{tpu_custom_call.1} parent=31 // pred_region
          %234 = dma.done [#allocation7], 2048
        $region40: #{tpu_custom_call.1} parent=31 // pred_fallthru
          _
        %s235 = sand.u32 %s50, 1
        %s236 = scalar_lea.sflag [#allocation4], %s235
        %s237 = sand.u32 %s50, 1
        %s238 = smul.addr %s237, 512
        %s239 = scalar_lea.vmem [#allocation3], %s238
        %p240 = pneg %p63
        %p241 = pneg %p60
        %p242 = pneg %p91
        %p243 = pneg %p88
        %p244 = scmp.lt.s32.totalorder %s27, 0
        %s245 = scalar_select %p244, %s27, 0
        %s246 = scalar_lea.vmem %s2, %s245
        %p247 = pneg %p117
        %p248 = pneg %p114
        %p249 = pneg %p145
        %p250 = pneg %p142
        %s251 = sand.u32 %s132, 1
        %s252 = scalar_lea.sflag [#allocation5], %s251
        %s253 = sand.u32 %s132, 1
        %s254 = smul.addr %s253, 256
        %s255 = scalar_lea.vmem [#allocation8], %s254
        %s256 = smul.u32 64, %s26
        %s257 = smul.u32 2, %s28
        %s258 = smul.u32 32, %s28
        %p259 = scmp.lt.s32.totalorder %s27, 0
        %s260 = scalar_select %p259, %s27, 0
        %s261 = scalar_lea.vmem %s2, %s260
        %s262 = smul.u32 64, %s26
        %p263 = scmp.eq.s32.totalorder %s28, 0
        // Predicated region
        $region41: #{tpu_custom_call.1} parent=31 // pred_check
          %p264 = pneg %p263
        $region42: #{tpu_custom_call.1} parent=31 // pred_check_branch
          %266 = sbr.rel (%p264) target = $region44
        $region43: #{tpu_custom_call.1} parent=31 // pred_region
          %v267 = vld [vmem:[%s261] sm:$0x1]
          %v269 = vperm.slane %v267, 0
          %271 = vst [vmem:[#allocation2] sm:$0xff] %v269
          %272 = vst [vmem:[#allocation2 + $0x8] sm:$0xff] %v269
          %273 = vst [vmem:[#allocation2 + $0x10] sm:$0xff] %v269
          %274 = vst [vmem:[#allocation2 + $0x18] sm:$0xff] %v269
          %275 = vst [vmem:[#allocation2 + $0x20] sm:$0xff] %v269
          %276 = vst [vmem:[#allocation2 + $0x28] sm:$0xff] %v269
          %277 = vst [vmem:[#allocation2 + $0x30] sm:$0xff] %v269
          %278 = vst [vmem:[#allocation2 + $0x38] sm:$0xff] %v269
          %279 = vst [vmem:[#allocation2 + $0x40] sm:$0xff] %v269
          %280 = vst [vmem:[#allocation2 + $0x48] sm:$0xff] %v269
          %281 = vst [vmem:[#allocation2 + $0x50] sm:$0xff] %v269
          %282 = vst [vmem:[#allocation2 + $0x58] sm:$0xff] %v269
          %283 = vst [vmem:[#allocation2 + $0x60] sm:$0xff] %v269
          %284 = vst [vmem:[#allocation2 + $0x68] sm:$0xff] %v269
          %285 = vst [vmem:[#allocation2 + $0x70] sm:$0xff] %v269
          %286 = vst [vmem:[#allocation2 + $0x78] sm:$0xff] %v269
          %287 = vst [vmem:[#allocation2 + $0x80] sm:$0xff] %v269
          %288 = vst [vmem:[#allocation2 + $0x88] sm:$0xff] %v269
          %289 = vst [vmem:[#allocation2 + $0x90] sm:$0xff] %v269
          %290 = vst [vmem:[#allocation2 + $0x98] sm:$0xff] %v269
          %291 = vst [vmem:[#allocation2 + $0xa0] sm:$0xff] %v269
          %292 = vst [vmem:[#allocation2 + $0xa8] sm:$0xff] %v269
          %293 = vst [vmem:[#allocation2 + $0xb0] sm:$0xff] %v269
          %294 = vst [vmem:[#allocation2 + $0xb8] sm:$0xff] %v269
          %295 = vst [vmem:[#allocation2 + $0xc0] sm:$0xff] %v269
          %296 = vst [vmem:[#allocation2 + $0xc8] sm:$0xff] %v269
          %297 = vst [vmem:[#allocation2 + $0xd0] sm:$0xff] %v269
          %298 = vst [vmem:[#allocation2 + $0xd8] sm:$0xff] %v269
          %299 = vst [vmem:[#allocation2 + $0xe0] sm:$0xff] %v269
          %300 = vst [vmem:[#allocation2 + $0xe8] sm:$0xff] %v269
          %301 = vst [vmem:[#allocation2 + $0xf0] sm:$0xff] %v269
          %302 = vst [vmem:[#allocation2 + $0xf8] sm:$0xff] %v269
          %303 = vst [vmem:[#allocation2 + $0x100] sm:$0xff] %v269
          %304 = vst [vmem:[#allocation2 + $0x108] sm:$0xff] %v269
          %305 = vst [vmem:[#allocation2 + $0x110] sm:$0xff] %v269
          %306 = vst [vmem:[#allocation2 + $0x118] sm:$0xff] %v269
          %307 = vst [vmem:[#allocation2 + $0x120] sm:$0xff] %v269
          %308 = vst [vmem:[#allocation2 + $0x128] sm:$0xff] %v269
          %309 = vst [vmem:[#allocation2 + $0x130] sm:$0xff] %v269
          %310 = vst [vmem:[#allocation2 + $0x138] sm:$0xff] %v269
          %311 = vst [vmem:[#allocation2 + $0x140] sm:$0xff] %v269
          %312 = vst [vmem:[#allocation2 + $0x148] sm:$0xff] %v269
          %313 = vst [vmem:[#allocation2 + $0x150] sm:$0xff] %v269
          %314 = vst [vmem:[#allocation2 + $0x158] sm:$0xff] %v269
          %315 = vst [vmem:[#allocation2 + $0x160] sm:$0xff] %v269
          %316 = vst [vmem:[#allocation2 + $0x168] sm:$0xff] %v269
          %317 = vst [vmem:[#allocation2 + $0x170] sm:$0xff] %v269
          %318 = vst [vmem:[#allocation2 + $0x178] sm:$0xff] %v269
          %319 = vst [vmem:[#allocation2 + $0x180] sm:$0xff] %v269
          %320 = vst [vmem:[#allocation2 + $0x188] sm:$0xff] %v269
          %321 = vst [vmem:[#allocation2 + $0x190] sm:$0xff] %v269
          %322 = vst [vmem:[#allocation2 + $0x198] sm:$0xff] %v269
          %323 = vst [vmem:[#allocation2 + $0x1a0] sm:$0xff] %v269
          %324 = vst [vmem:[#allocation2 + $0x1a8] sm:$0xff] %v269
          %325 = vst [vmem:[#allocation2 + $0x1b0] sm:$0xff] %v269
          %326 = vst [vmem:[#allocation2 + $0x1b8] sm:$0xff] %v269
          %327 = vst [vmem:[#allocation2 + $0x1c0] sm:$0xff] %v269
          %328 = vst [vmem:[#allocation2 + $0x1c8] sm:$0xff] %v269
          %329 = vst [vmem:[#allocation2 + $0x1d0] sm:$0xff] %v269
          %330 = vst [vmem:[#allocation2 + $0x1d8] sm:$0xff] %v269
          %331 = vst [vmem:[#allocation2 + $0x1e0] sm:$0xff] %v269
          %332 = vst [vmem:[#allocation2 + $0x1e8] sm:$0xff] %v269
          %333 = vst [vmem:[#allocation2 + $0x1f0] sm:$0xff] %v269
          %334 = vst [vmem:[#allocation2 + $0x1f8] sm:$0xff] %v269
        $region44: #{tpu_custom_call.1} parent=31 // pred_fallthru
          _
        %v335 = vld [vmem:[#allocation2] sm:$0xff]
        %v336 = vld [vmem:[#allocation2 + $0x8] sm:$0xff]
        %v337 = vld [vmem:[#allocation2 + $0x10] sm:$0xff]
        %v338 = vld [vmem:[#allocation2 + $0x18] sm:$0xff]
        %v339 = vld [vmem:[#allocation2 + $0x20] sm:$0xff]
        %v340 = vld [vmem:[#allocation2 + $0x28] sm:$0xff]
        %v341 = vld [vmem:[#allocation2 + $0x30] sm:$0xff]
        %v342 = vld [vmem:[#allocation2 + $0x38] sm:$0xff]
        %v343 = vld [vmem:[#allocation2 + $0x40] sm:$0xff]
        %v344 = vld [vmem:[#allocation2 + $0x48] sm:$0xff]
        %v345 = vld [vmem:[#allocation2 + $0x50] sm:$0xff]
        %v346 = vld [vmem:[#allocation2 + $0x58] sm:$0xff]
        %v347 = vld [vmem:[#allocation2 + $0x60] sm:$0xff]
        %v348 = vld [vmem:[#allocation2 + $0x68] sm:$0xff]
        %v349 = vld [vmem:[#allocation2 + $0x70] sm:$0xff]
        %v350 = vld [vmem:[#allocation2 + $0x78] sm:$0xff]
        %v351 = vld [vmem:[#allocation2 + $0x80] sm:$0xff]
        %v352 = vld [vmem:[#allocation2 + $0x88] sm:$0xff]
        %v353 = vld [vmem:[#allocation2 + $0x90] sm:$0xff]
        %v354 = vld [vmem:[#allocation2 + $0x98] sm:$0xff]
        %v355 = vld [vmem:[#allocation2 + $0xa0] sm:$0xff]
        %v356 = vld [vmem:[#allocation2 + $0xa8] sm:$0xff]
        %v357 = vld [vmem:[#allocation2 + $0xb0] sm:$0xff]
        %v358 = vld [vmem:[#allocation2 + $0xb8] sm:$0xff]
        %v359 = vld [vmem:[#allocation2 + $0xc0] sm:$0xff]
        %v360 = vld [vmem:[#allocation2 + $0xc8] sm:$0xff]
        %v361 = vld [vmem:[#allocation2 + $0xd0] sm:$0xff]
        %v362 = vld [vmem:[#allocation2 + $0xd8] sm:$0xff]
        %v363 = vld [vmem:[#allocation2 + $0xe0] sm:$0xff]
        %v364 = vld [vmem:[#allocation2 + $0xe8] sm:$0xff]
        %v365 = vld [vmem:[#allocation2 + $0xf0] sm:$0xff]
        %v366 = vld [vmem:[#allocation2 + $0xf8] sm:$0xff]
        %v367 = vld [vmem:[#allocation2 + $0x100] sm:$0xff]
        %v368 = vld [vmem:[#allocation2 + $0x108] sm:$0xff]
        %v369 = vld [vmem:[#allocation2 + $0x110] sm:$0xff]
        %v370 = vld [vmem:[#allocation2 + $0x118] sm:$0xff]
        %v371 = vld [vmem:[#allocation2 + $0x120] sm:$0xff]
        %v372 = vld [vmem:[#allocation2 + $0x128] sm:$0xff]
        %v373 = vld [vmem:[#allocation2 + $0x130] sm:$0xff]
        %v374 = vld [vmem:[#allocation2 + $0x138] sm:$0xff]
        %v375 = vld [vmem:[#allocation2 + $0x140] sm:$0xff]
        %v376 = vld [vmem:[#allocation2 + $0x148] sm:$0xff]
        %v377 = vld [vmem:[#allocation2 + $0x150] sm:$0xff]
        %v378 = vld [vmem:[#allocation2 + $0x158] sm:$0xff]
        %v379 = vld [vmem:[#allocation2 + $0x160] sm:$0xff]
        %v380 = vld [vmem:[#allocation2 + $0x168] sm:$0xff]
        %v381 = vld [vmem:[#allocation2 + $0x170] sm:$0xff]
        %v382 = vld [vmem:[#allocation2 + $0x178] sm:$0xff]
        %v383 = vld [vmem:[#allocation2 + $0x180] sm:$0xff]
        %v384 = vld [vmem:[#allocation2 + $0x188] sm:$0xff]
        %v385 = vld [vmem:[#allocation2 + $0x190] sm:$0xff]
        %v386 = vld [vmem:[#allocation2 + $0x198] sm:$0xff]
        %v387 = vld [vmem:[#allocation2 + $0x1a0] sm:$0xff]
        %v388 = vld [vmem:[#allocation2 + $0x1a8] sm:$0xff]
        %v389 = vld [vmem:[#allocation2 + $0x1b0] sm:$0xff]
        %v390 = vld [vmem:[#allocation2 + $0x1b8] sm:$0xff]
        %v391 = vld [vmem:[#allocation2 + $0x1c0] sm:$0xff]
        %v392 = vld [vmem:[#allocation2 + $0x1c8] sm:$0xff]
        %v393 = vld [vmem:[#allocation2 + $0x1d0] sm:$0xff]
        %v394 = vld [vmem:[#allocation2 + $0x1d8] sm:$0xff]
        %v395 = vld [vmem:[#allocation2 + $0x1e0] sm:$0xff]
        %v396 = vld [vmem:[#allocation2 + $0x1e8] sm:$0xff]
        %v397 = vld [vmem:[#allocation2 + $0x1f0] sm:$0xff]
        %v398 = vld [vmem:[#allocation2 + $0x1f8] sm:$0xff]
        %v399 = vld [vmem:[%s224] sm:$0xff]
        %v400 = vld [vmem:[%s224 + $0x8] sm:$0xff]
        %v401 = vld [vmem:[%s224 + $0x10] sm:$0xff]
        %v402 = vld [vmem:[%s224 + $0x18] sm:$0xff]
        %v403 = vld [vmem:[%s224 + $0x20] sm:$0xff]
        %v404 = vld [vmem:[%s224 + $0x28] sm:$0xff]
        %v405 = vld [vmem:[%s224 + $0x30] sm:$0xff]
        %v406 = vld [vmem:[%s224 + $0x38] sm:$0xff]
        %v407 = vld [vmem:[%s224 + $0x40] sm:$0xff]
        %v408 = vld [vmem:[%s224 + $0x48] sm:$0xff]
        %v409 = vld [vmem:[%s224 + $0x50] sm:$0xff]
        %v410 = vld [vmem:[%s224 + $0x58] sm:$0xff]
        %v411 = vld [vmem:[%s224 + $0x60] sm:$0xff]
        %v412 = vld [vmem:[%s224 + $0x68] sm:$0xff]
        %v413 = vld [vmem:[%s224 + $0x70] sm:$0xff]
        %v414 = vld [vmem:[%s224 + $0x78] sm:$0xff]
        %v415 = vld [vmem:[%s224 + $0x80] sm:$0xff]
        %v416 = vld [vmem:[%s224 + $0x88] sm:$0xff]
        %v417 = vld [vmem:[%s224 + $0x90] sm:$0xff]
        %v418 = vld [vmem:[%s224 + $0x98] sm:$0xff]
        %v419 = vld [vmem:[%s224 + $0xa0] sm:$0xff]
        %v420 = vld [vmem:[%s224 + $0xa8] sm:$0xff]
        %v421 = vld [vmem:[%s224 + $0xb0] sm:$0xff]
        %v422 = vld [vmem:[%s224 + $0xb8] sm:$0xff]
        %v423 = vld [vmem:[%s224 + $0xc0] sm:$0xff]
        %v424 = vld [vmem:[%s224 + $0xc8] sm:$0xff]
        %v425 = vld [vmem:[%s224 + $0xd0] sm:$0xff]
        %v426 = vld [vmem:[%s224 + $0xd8] sm:$0xff]
        %v427 = vld [vmem:[%s224 + $0xe0] sm:$0xff]
        %v428 = vld [vmem:[%s224 + $0xe8] sm:$0xff]
        %v429 = vld [vmem:[%s224 + $0xf0] sm:$0xff]
        %v430 = vld [vmem:[%s224 + $0xf8] sm:$0xff]
        %v431 = vld [vmem:[%s224 + $0x100] sm:$0xff]
        %v432 = vld [vmem:[%s224 + $0x108] sm:$0xff]
        %v433 = vld [vmem:[%s224 + $0x110] sm:$0xff]
        %v434 = vld [vmem:[%s224 + $0x118] sm:$0xff]
        %v435 = vld [vmem:[%s224 + $0x120] sm:$0xff]
        %v436 = vld [vmem:[%s224 + $0x128] sm:$0xff]
        %v437 = vld [vmem:[%s224 + $0x130] sm:$0xff]
        %v438 = vld [vmem:[%s224 + $0x138] sm:$0xff]
        %v439 = vld [vmem:[%s224 + $0x140] sm:$0xff]
        %v440 = vld [vmem:[%s224 + $0x148] sm:$0xff]
        %v441 = vld [vmem:[%s224 + $0x150] sm:$0xff]
        %v442 = vld [vmem:[%s224 + $0x158] sm:$0xff]
        %v443 = vld [vmem:[%s224 + $0x160] sm:$0xff]
        %v444 = vld [vmem:[%s224 + $0x168] sm:$0xff]
        %v445 = vld [vmem:[%s224 + $0x170] sm:$0xff]
        %v446 = vld [vmem:[%s224 + $0x178] sm:$0xff]
        %v447 = vld [vmem:[%s224 + $0x180] sm:$0xff]
        %v448 = vld [vmem:[%s224 + $0x188] sm:$0xff]
        %v449 = vld [vmem:[%s224 + $0x190] sm:$0xff]
        %v450 = vld [vmem:[%s224 + $0x198] sm:$0xff]
        %v451 = vld [vmem:[%s224 + $0x1a0] sm:$0xff]
        %v452 = vld [vmem:[%s224 + $0x1a8] sm:$0xff]
        %v453 = vld [vmem:[%s224 + $0x1b0] sm:$0xff]
        %v454 = vld [vmem:[%s224 + $0x1b8] sm:$0xff]
        %v455 = vld [vmem:[%s224 + $0x1c0] sm:$0xff]
        %v456 = vld [vmem:[%s224 + $0x1c8] sm:$0xff]
        %v457 = vld [vmem:[%s224 + $0x1d0] sm:$0xff]
        %v458 = vld [vmem:[%s224 + $0x1d8] sm:$0xff]
        %v459 = vld [vmem:[%s224 + $0x1e0] sm:$0xff]
        %v460 = vld [vmem:[%s224 + $0x1e8] sm:$0xff]
        %v461 = vld [vmem:[%s224 + $0x1f0] sm:$0xff]
        %v462 = vld [vmem:[%s224 + $0x1f8] sm:$0xff]
        %v463 = vld [vmem:[#allocation6] sm:$0xf]
        %v464 = vld [vmem:[#allocation6 + $0x4] sm:$0xf]
        %v465 = vld [vmem:[#allocation6 + $0x8] sm:$0xf]
        %v466 = vld [vmem:[#allocation6 + $0xc] sm:$0xf]
        %v467 = vld [vmem:[#allocation6 + $0x10] sm:$0xf]
        %v468 = vld [vmem:[#allocation6 + $0x14] sm:$0xf]
        %v469 = vld [vmem:[#allocation6 + $0x18] sm:$0xf]
        %v470 = vld [vmem:[#allocation6 + $0x1c] sm:$0xf]
        %v471 = vld [vmem:[#allocation6 + $0x20] sm:$0xf]
        %v472 = vld [vmem:[#allocation6 + $0x24] sm:$0xf]
        %v473 = vld [vmem:[#allocation6 + $0x28] sm:$0xf]
        %v474 = vld [vmem:[#allocation6 + $0x2c] sm:$0xf]
        %v475 = vld [vmem:[#allocation6 + $0x30] sm:$0xf]
        %v476 = vld [vmem:[#allocation6 + $0x34] sm:$0xf]
        %v477 = vld [vmem:[#allocation6 + $0x38] sm:$0xf]
        %v478 = vld [vmem:[#allocation6 + $0x3c] sm:$0xf]
        %v479 = vld [vmem:[#allocation6 + $0x40] sm:$0xf]
        %v480 = vld [vmem:[#allocation6 + $0x44] sm:$0xf]
        %v481 = vld [vmem:[#allocation6 + $0x48] sm:$0xf]
        %v482 = vld [vmem:[#allocation6 + $0x4c] sm:$0xf]
        %v483 = vld [vmem:[#allocation6 + $0x50] sm:$0xf]
        %v484 = vld [vmem:[#allocation6 + $0x54] sm:$0xf]
        %v485 = vld [vmem:[#allocation6 + $0x58] sm:$0xf]
        %v486 = vld [vmem:[#allocation6 + $0x5c] sm:$0xf]
        %v487 = vld [vmem:[#allocation6 + $0x60] sm:$0xf]
        %v488 = vld [vmem:[#allocation6 + $0x64] sm:$0xf]
        %v489 = vld [vmem:[#allocation6 + $0x68] sm:$0xf]
        %v490 = vld [vmem:[#allocation6 + $0x6c] sm:$0xf]
        %v491 = vld [vmem:[#allocation6 + $0x70] sm:$0xf]
        %v492 = vld [vmem:[#allocation6 + $0x74] sm:$0xf]
        %v493 = vld [vmem:[#allocation6 + $0x78] sm:$0xf]
        %v494 = vld [vmem:[#allocation6 + $0x7c] sm:$0xf]
        %v559 = vunpack.c.l.b16 %v399
        %v560 = vunpack.c.h.b16 %v399
        %v561 = vunpack.c.l.b16 %v400
        %v562 = vunpack.c.h.b16 %v400
        %v563 = vunpack.c.l.b16 %v401
        %v564 = vunpack.c.h.b16 %v401
        %v565 = vunpack.c.l.b16 %v402
        %v566 = vunpack.c.h.b16 %v402
        %v567 = vunpack.c.l.b16 %v403
        %v568 = vunpack.c.h.b16 %v403
        %v569 = vunpack.c.l.b16 %v404
        %v570 = vunpack.c.h.b16 %v404
        %v571 = vunpack.c.l.b16 %v405
        %v572 = vunpack.c.h.b16 %v405
        %v573 = vunpack.c.l.b16 %v406
        %v574 = vunpack.c.h.b16 %v406
        %v575 = vunpack.c.l.b16 %v407
        %v576 = vunpack.c.h.b16 %v407
        %v577 = vunpack.c.l.b16 %v408
        %v578 = vunpack.c.h.b16 %v408
        %v579 = vunpack.c.l.b16 %v409
        %v580 = vunpack.c.h.b16 %v409
        %v581 = vunpack.c.l.b16 %v410
        %v582 = vunpack.c.h.b16 %v410
        %v583 = vunpack.c.l.b16 %v411
        %v584 = vunpack.c.h.b16 %v411
        %v585 = vunpack.c.l.b16 %v412
        %v586 = vunpack.c.h.b16 %v412
        %v587 = vunpack.c.l.b16 %v413
        %v588 = vunpack.c.h.b16 %v413
        %v589 = vunpack.c.l.b16 %v414
        %v590 = vunpack.c.h.b16 %v414
        %v591 = vunpack.c.l.b16 %v415
        %v592 = vunpack.c.h.b16 %v415
        %v593 = vunpack.c.l.b16 %v416
        %v594 = vunpack.c.h.b16 %v416
        %v595 = vunpack.c.l.b16 %v417
        %v596 = vunpack.c.h.b16 %v417
        %v597 = vunpack.c.l.b16 %v418
        %v598 = vunpack.c.h.b16 %v418
        %v599 = vunpack.c.l.b16 %v419
        %v600 = vunpack.c.h.b16 %v419
        %v601 = vunpack.c.l.b16 %v420
        %v602 = vunpack.c.h.b16 %v420
        %v603 = vunpack.c.l.b16 %v421
        %v604 = vunpack.c.h.b16 %v421
        %v605 = vunpack.c.l.b16 %v422
        %v606 = vunpack.c.h.b16 %v422
        %v607 = vunpack.c.l.b16 %v423
        %v608 = vunpack.c.h.b16 %v423
        %v609 = vunpack.c.l.b16 %v424
        %v610 = vunpack.c.h.b16 %v424
        %v611 = vunpack.c.l.b16 %v425
        %v612 = vunpack.c.h.b16 %v425
        %v613 = vunpack.c.l.b16 %v426
        %v614 = vunpack.c.h.b16 %v426
        %v615 = vunpack.c.l.b16 %v427
        %v616 = vunpack.c.h.b16 %v427
        %v617 = vunpack.c.l.b16 %v428
        %v618 = vunpack.c.h.b16 %v428
        %v619 = vunpack.c.l.b16 %v429
        %v620 = vunpack.c.h.b16 %v429
        %v621 = vunpack.c.l.b16 %v430
        %v622 = vunpack.c.h.b16 %v430
        %v623 = vunpack.c.l.b16 %v431
        %v624 = vunpack.c.h.b16 %v431
        %v625 = vunpack.c.l.b16 %v432
        %v626 = vunpack.c.h.b16 %v432
        %v627 = vunpack.c.l.b16 %v433
        %v628 = vunpack.c.h.b16 %v433
        %v629 = vunpack.c.l.b16 %v434
        %v630 = vunpack.c.h.b16 %v434
        %v631 = vunpack.c.l.b16 %v435
        %v632 = vunpack.c.h.b16 %v435
        %v633 = vunpack.c.l.b16 %v436
        %v634 = vunpack.c.h.b16 %v436
        %v635 = vunpack.c.l.b16 %v437
        %v636 = vunpack.c.h.b16 %v437
        %v637 = vunpack.c.l.b16 %v438
        %v638 = vunpack.c.h.b16 %v438
        %v639 = vunpack.c.l.b16 %v439
        %v640 = vunpack.c.h.b16 %v439
        %v641 = vunpack.c.l.b16 %v440
        %v642 = vunpack.c.h.b16 %v440
        %v643 = vunpack.c.l.b16 %v441
        %v644 = vunpack.c.h.b16 %v441
        %v645 = vunpack.c.l.b16 %v442
        %v646 = vunpack.c.h.b16 %v442
        %v647 = vunpack.c.l.b16 %v443
        %v648 = vunpack.c.h.b16 %v443
        %v649 = vunpack.c.l.b16 %v444
        %v650 = vunpack.c.h.b16 %v444
        %v651 = vunpack.c.l.b16 %v445
        %v652 = vunpack.c.h.b16 %v445
        %v653 = vunpack.c.l.b16 %v446
        %v654 = vunpack.c.h.b16 %v446
        %v655 = vunpack.c.l.b16 %v447
        %v656 = vunpack.c.h.b16 %v447
        %v657 = vunpack.c.l.b16 %v448
        %v658 = vunpack.c.h.b16 %v448
        %v659 = vunpack.c.l.b16 %v449
        %v660 = vunpack.c.h.b16 %v449
        %v661 = vunpack.c.l.b16 %v450
        %v662 = vunpack.c.h.b16 %v450
        %v663 = vunpack.c.l.b16 %v451
        %v664 = vunpack.c.h.b16 %v451
        %v665 = vunpack.c.l.b16 %v452
        %v666 = vunpack.c.h.b16 %v452
        %v667 = vunpack.c.l.b16 %v453
        %v668 = vunpack.c.h.b16 %v453
        %v669 = vunpack.c.l.b16 %v454
        %v670 = vunpack.c.h.b16 %v454
        %v671 = vunpack.c.l.b16 %v455
        %v672 = vunpack.c.h.b16 %v455
        %v673 = vunpack.c.l.b16 %v456
        %v674 = vunpack.c.h.b16 %v456
        %v675 = vunpack.c.l.b16 %v457
        %v676 = vunpack.c.h.b16 %v457
        %v677 = vunpack.c.l.b16 %v458
        %v678 = vunpack.c.h.b16 %v458
        %v679 = vunpack.c.l.b16 %v459
        %v680 = vunpack.c.h.b16 %v459
        %v681 = vunpack.c.l.b16 %v460
        %v682 = vunpack.c.h.b16 %v460
        %v683 = vunpack.c.l.b16 %v461
        %v684 = vunpack.c.h.b16 %v461
        %v685 = vunpack.c.l.b16 %v462
        %v686 = vunpack.c.h.b16 %v462
        %v687 = vpack.c.b16 %v561, %v559
        %v688 = vpack.c.b16 %v562, %v560
        %v689 = vpack.c.b16 %v565, %v563
        %v690 = vpack.c.b16 %v566, %v564
        %v691 = vpack.c.b16 %v569, %v567
        %v692 = vpack.c.b16 %v570, %v568
        %v693 = vpack.c.b16 %v573, %v571
        %v694 = vpack.c.b16 %v574, %v572
        %v695 = vpack.c.b16 %v577, %v575
        %v696 = vpack.c.b16 %v578, %v576
        %v697 = vpack.c.b16 %v581, %v579
        %v698 = vpack.c.b16 %v582, %v580
        %v699 = vpack.c.b16 %v585, %v583
        %v700 = vpack.c.b16 %v586, %v584
        %v701 = vpack.c.b16 %v589, %v587
        %v702 = vpack.c.b16 %v590, %v588
        %v703 = vpack.c.b16 %v593, %v591
        %v704 = vpack.c.b16 %v594, %v592
        %v705 = vpack.c.b16 %v597, %v595
        %v706 = vpack.c.b16 %v598, %v596
        %v707 = vpack.c.b16 %v601, %v599
        %v708 = vpack.c.b16 %v602, %v600
        %v709 = vpack.c.b16 %v605, %v603
        %v710 = vpack.c.b16 %v606, %v604
        %v711 = vpack.c.b16 %v609, %v607
        %v712 = vpack.c.b16 %v610, %v608
        %v713 = vpack.c.b16 %v613, %v611
        %v714 = vpack.c.b16 %v614, %v612
        %v715 = vpack.c.b16 %v617, %v615
        %v716 = vpack.c.b16 %v618, %v616
        %v717 = vpack.c.b16 %v621, %v619
        %v718 = vpack.c.b16 %v622, %v620
        %v719 = vpack.c.b16 %v625, %v623
        %v720 = vpack.c.b16 %v626, %v624
        %v721 = vpack.c.b16 %v629, %v627
        %v722 = vpack.c.b16 %v630, %v628
        %v723 = vpack.c.b16 %v633, %v631
        %v724 = vpack.c.b16 %v634, %v632
        %v725 = vpack.c.b16 %v637, %v635
        %v726 = vpack.c.b16 %v638, %v636
        %v727 = vpack.c.b16 %v641, %v639
        %v728 = vpack.c.b16 %v642, %v640
        %v729 = vpack.c.b16 %v645, %v643
        %v730 = vpack.c.b16 %v646, %v644
        %v731 = vpack.c.b16 %v649, %v647
        %v732 = vpack.c.b16 %v650, %v648
        %v733 = vpack.c.b16 %v653, %v651
        %v734 = vpack.c.b16 %v654, %v652
        %v735 = vpack.c.b16 %v657, %v655
        %v736 = vpack.c.b16 %v658, %v656
        %v737 = vpack.c.b16 %v661, %v659
        %v738 = vpack.c.b16 %v662, %v660
        %v739 = vpack.c.b16 %v665, %v663
        %v740 = vpack.c.b16 %v666, %v664
        %v741 = vpack.c.b16 %v669, %v667
        %v742 = vpack.c.b16 %v670, %v668
        %v743 = vpack.c.b16 %v673, %v671
        %v744 = vpack.c.b16 %v674, %v672
        %v745 = vpack.c.b16 %v677, %v675
        %v746 = vpack.c.b16 %v678, %v676
        %v747 = vpack.c.b16 %v681, %v679
        %v748 = vpack.c.b16 %v682, %v680
        %v749 = vpack.c.b16 %v685, %v683
        %v750 = vpack.c.b16 %v686, %v684
        %v847 = vunpack.c.l.b16 %v463
        %v848 = vunpack.c.l.b16 %v464
        %v849 = vunpack.c.l.b16 %v465
        %v850 = vunpack.c.l.b16 %v466
        %v851 = vunpack.c.l.b16 %v467
        %v852 = vunpack.c.l.b16 %v468
        %v853 = vunpack.c.l.b16 %v469
        %v854 = vunpack.c.l.b16 %v470
        %v855 = vunpack.c.l.b16 %v471
        %v856 = vunpack.c.l.b16 %v472
        %v857 = vunpack.c.l.b16 %v473
        %v858 = vunpack.c.l.b16 %v474
        %v859 = vunpack.c.l.b16 %v475
        %v860 = vunpack.c.l.b16 %v476
        %v861 = vunpack.c.l.b16 %v477
        %v862 = vunpack.c.l.b16 %v478
        %v863 = vunpack.c.l.b16 %v479
        %v864 = vunpack.c.l.b16 %v480
        %v865 = vunpack.c.l.b16 %v481
        %v866 = vunpack.c.l.b16 %v482
        %v867 = vunpack.c.l.b16 %v483
        %v868 = vunpack.c.l.b16 %v484
        %v869 = vunpack.c.l.b16 %v485
        %v870 = vunpack.c.l.b16 %v486
        %v871 = vunpack.c.l.b16 %v487
        %v872 = vunpack.c.l.b16 %v488
        %v873 = vunpack.c.l.b16 %v489
        %v874 = vunpack.c.l.b16 %v490
        %v875 = vunpack.c.l.b16 %v491
        %v876 = vunpack.c.l.b16 %v492
        %v877 = vunpack.c.l.b16 %v493
        %v878 = vunpack.c.l.b16 %v494
        %v879 = vpack.c.b16 %v848, %v847
        %v880 = vpack.c.b16 %v850, %v849
        %v881 = vpack.c.b16 %v852, %v851
        %v882 = vpack.c.b16 %v854, %v853
        %v883 = vpack.c.b16 %v856, %v855
        %v884 = vpack.c.b16 %v858, %v857
        %v885 = vpack.c.b16 %v860, %v859
        %v886 = vpack.c.b16 %v862, %v861
        %v887 = vpack.c.b16 %v864, %v863
        %v888 = vpack.c.b16 %v866, %v865
        %v889 = vpack.c.b16 %v868, %v867
        %v890 = vpack.c.b16 %v870, %v869
        %v891 = vpack.c.b16 %v872, %v871
        %v892 = vpack.c.b16 %v874, %v873
        %v893 = vpack.c.b16 %v876, %v875
        %v894 = vpack.c.b16 %v878, %v877
        %911 = vmatpush.bf16.msra.mxu0 %v886
        %912 = vmatpush.bf16.msra.mxu0 %v885
        %913 = vmatpush.bf16.msra.mxu0 %v884
        %914 = vmatpush.bf16.msra.mxu0 %v883
        %915 = vmatpush.bf16.msra.mxu0 %v882
        %916 = vmatpush.bf16.msra.mxu0 %v881
        %917 = vmatpush.bf16.msra.mxu0 %v880
        %918 = vmatpush.bf16.msra.mxu0 %v879
        %919 = vmatmul.bf16.gmra.mxu0 %v687
        %v920 = vpop.f32.mrf.mxu0
        %v921 = vadd.f32 0.0, %v920
        %v922 = vpop.f32.mrf.mxu0
        %v923 = vadd.f32 0.0, %v922
        %924 = vmatmul.bf16.gmra.mxu0 %v689
        %v925 = vpop.f32.mrf.mxu0
        %v926 = vadd.f32 0.0, %v925
        %v927 = vpop.f32.mrf.mxu0
        %v928 = vadd.f32 0.0, %v927
        %929 = vmatmul.bf16.gmra.mxu0 %v691
        %v930 = vpop.f32.mrf.mxu0
        %v931 = vadd.f32 0.0, %v930
        %v932 = vpop.f32.mrf.mxu0
        %v933 = vadd.f32 0.0, %v932
        %934 = vmatmul.bf16.gmra.mxu0 %v693
        %v935 = vpop.f32.mrf.mxu0
        %v936 = vadd.f32 0.0, %v935
        %v937 = vpop.f32.mrf.mxu0
        %v938 = vadd.f32 0.0, %v937
        %939 = vmatmul.bf16.gmra.mxu0 %v695
        %v940 = vpop.f32.mrf.mxu0
        %v941 = vadd.f32 0.0, %v940
        %v942 = vpop.f32.mrf.mxu0
        %v943 = vadd.f32 0.0, %v942
        %944 = vmatmul.bf16.gmra.mxu0 %v697
        %v945 = vpop.f32.mrf.mxu0
        %v946 = vadd.f32 0.0, %v945
        %v947 = vpop.f32.mrf.mxu0
        %v948 = vadd.f32 0.0, %v947
        %949 = vmatmul.bf16.gmra.mxu0 %v699
        %v950 = vpop.f32.mrf.mxu0
        %v951 = vadd.f32 0.0, %v950
        %v952 = vpop.f32.mrf.mxu0
        %v953 = vadd.f32 0.0, %v952
        %954 = vmatmul.bf16.gmra.mxu0 %v701
        %v955 = vpop.f32.mrf.mxu0
        %v956 = vadd.f32 0.0, %v955
        %v957 = vpop.f32.mrf.mxu0
        %v958 = vadd.f32 0.0, %v957
        %959 = vmatmul.bf16.gmra.mxu0 %v703
        %v960 = vpop.f32.mrf.mxu0
        %v961 = vadd.f32 0.0, %v960
        %v962 = vpop.f32.mrf.mxu0
        %v963 = vadd.f32 0.0, %v962
        %964 = vmatmul.bf16.gmra.mxu0 %v705
        %v965 = vpop.f32.mrf.mxu0
        %v966 = vadd.f32 0.0, %v965
        %v967 = vpop.f32.mrf.mxu0
        %v968 = vadd.f32 0.0, %v967
        %969 = vmatmul.bf16.gmra.mxu0 %v707
        %v970 = vpop.f32.mrf.mxu0
        %v971 = vadd.f32 0.0, %v970
        %v972 = vpop.f32.mrf.mxu0
        %v973 = vadd.f32 0.0, %v972
        %974 = vmatmul.bf16.gmra.mxu0 %v709
        %v975 = vpop.f32.mrf.mxu0
        %v976 = vadd.f32 0.0, %v975
        %v977 = vpop.f32.mrf.mxu0
        %v978 = vadd.f32 0.0, %v977
        %979 = vmatmul.bf16.gmra.mxu0 %v711
        %v980 = vpop.f32.mrf.mxu0
        %v981 = vadd.f32 0.0, %v980
        %v982 = vpop.f32.mrf.mxu0
        %v983 = vadd.f32 0.0, %v982
        %984 = vmatmul.bf16.gmra.mxu0 %v713
        %v985 = vpop.f32.mrf.mxu0
        %v986 = vadd.f32 0.0, %v985
        %v987 = vpop.f32.mrf.mxu0
        %v988 = vadd.f32 0.0, %v987
        %989 = vmatmul.bf16.gmra.mxu0 %v715
        %v990 = vpop.f32.mrf.mxu0
        %v991 = vadd.f32 0.0, %v990
        %v992 = vpop.f32.mrf.mxu0
        %v993 = vadd.f32 0.0, %v992
        %994 = vmatmul.bf16.gmra.mxu0 %v717
        %v995 = vpop.f32.mrf.mxu0
        %v996 = vadd.f32 0.0, %v995
        %v997 = vpop.f32.mrf.mxu0
        %v998 = vadd.f32 0.0, %v997
        %999 = vmatmul.bf16.gmra.mxu0 %v719
        %v1000 = vpop.f32.mrf.mxu0
        %v1001 = vadd.f32 0.0, %v1000
        %v1002 = vpop.f32.mrf.mxu0
        %v1003 = vadd.f32 0.0, %v1002
        %1004 = vmatmul.bf16.gmra.mxu0 %v721
        %v1005 = vpop.f32.mrf.mxu0
        %v1006 = vadd.f32 0.0, %v1005
        %v1007 = vpop.f32.mrf.mxu0
        %v1008 = vadd.f32 0.0, %v1007
        %1009 = vmatmul.bf16.gmra.mxu0 %v723
        %v1010 = vpop.f32.mrf.mxu0
        %v1011 = vadd.f32 0.0, %v1010
        %v1012 = vpop.f32.mrf.mxu0
        %v1013 = vadd.f32 0.0, %v1012
        %1014 = vmatmul.bf16.gmra.mxu0 %v725
        %v1015 = vpop.f32.mrf.mxu0
        %v1016 = vadd.f32 0.0, %v1015
        %v1017 = vpop.f32.mrf.mxu0
        %v1018 = vadd.f32 0.0, %v1017
        %1019 = vmatmul.bf16.gmra.mxu0 %v727
        %v1020 = vpop.f32.mrf.mxu0
        %v1021 = vadd.f32 0.0, %v1020
        %v1022 = vpop.f32.mrf.mxu0
        %v1023 = vadd.f32 0.0, %v1022
        %1024 = vmatmul.bf16.gmra.mxu0 %v729
        %v1025 = vpop.f32.mrf.mxu0
        %v1026 = vadd.f32 0.0, %v1025
        %v1027 = vpop.f32.mrf.mxu0
        %v1028 = vadd.f32 0.0, %v1027
        %1029 = vmatmul.bf16.gmra.mxu0 %v731
        %v1030 = vpop.f32.mrf.mxu0
        %v1031 = vadd.f32 0.0, %v1030
        %v1032 = vpop.f32.mrf.mxu0
        %v1033 = vadd.f32 0.0, %v1032
        %1034 = vmatmul.bf16.gmra.mxu0 %v733
        %v1035 = vpop.f32.mrf.mxu0
        %v1036 = vadd.f32 0.0, %v1035
        %v1037 = vpop.f32.mrf.mxu0
        %v1038 = vadd.f32 0.0, %v1037
        %1039 = vmatmul.bf16.gmra.mxu0 %v735
        %v1040 = vpop.f32.mrf.mxu0
        %v1041 = vadd.f32 0.0, %v1040
        %v1042 = vpop.f32.mrf.mxu0
        %v1043 = vadd.f32 0.0, %v1042
        %1044 = vmatmul.bf16.gmra.mxu0 %v737
        %v1045 = vpop.f32.mrf.mxu0
        %v1046 = vadd.f32 0.0, %v1045
        %v1047 = vpop.f32.mrf.mxu0
        %v1048 = vadd.f32 0.0, %v1047
        %1049 = vmatmul.bf16.gmra.mxu0 %v739
        %v1050 = vpop.f32.mrf.mxu0
        %v1051 = vadd.f32 0.0, %v1050
        %v1052 = vpop.f32.mrf.mxu0
        %v1053 = vadd.f32 0.0, %v1052
        %1054 = vmatmul.bf16.gmra.mxu0 %v741
        %v1055 = vpop.f32.mrf.mxu0
        %v1056 = vadd.f32 0.0, %v1055
        %v1057 = vpop.f32.mrf.mxu0
        %v1058 = vadd.f32 0.0, %v1057
        %1059 = vmatmul.bf16.gmra.mxu0 %v743
        %v1060 = vpop.f32.mrf.mxu0
        %v1061 = vadd.f32 0.0, %v1060
        %v1062 = vpop.f32.mrf.mxu0
        %v1063 = vadd.f32 0.0, %v1062
        %1064 = vmatmul.bf16.gmra.mxu0 %v745
        %v1065 = vpop.f32.mrf.mxu0
        %v1066 = vadd.f32 0.0, %v1065
        %v1067 = vpop.f32.mrf.mxu0
        %v1068 = vadd.f32 0.0, %v1067
        %1069 = vmatmul.bf16.gmra.mxu0 %v747
        %v1070 = vpop.f32.mrf.mxu0
        %v1071 = vadd.f32 0.0, %v1070
        %v1072 = vpop.f32.mrf.mxu0
        %v1073 = vadd.f32 0.0, %v1072
        %1074 = vmatmul.bf16.gmra.mxu0 %v749
        %v1075 = vpop.f32.mrf.mxu0
        %v1076 = vadd.f32 0.0, %v1075
        %v1077 = vpop.f32.mrf.mxu0
        %v1078 = vadd.f32 0.0, %v1077
        %1079 = vdwg.mxu0
        %1080 = vmatpush.bf16.msra.mxu0 %v894
        %1081 = vmatpush.bf16.msra.mxu0 %v893
        %1082 = vmatpush.bf16.msra.mxu0 %v892
        %1083 = vmatpush.bf16.msra.mxu0 %v891
        %1084 = vmatpush.bf16.msra.mxu0 %v890
        %1085 = vmatpush.bf16.msra.mxu0 %v889
        %1086 = vmatpush.bf16.msra.mxu0 %v888
        %1087 = vmatpush.bf16.msra.mxu0 %v887
        %1088 = vmatmul.bf16.gmra.mxu0 %v688
        %v1089 = vpop.f32.mrf.mxu0
        %v1090 = vadd.f32 %v921, %v1089
        %v1091 = vpop.f32.mrf.mxu0
        %v1092 = vadd.f32 %v923, %v1091
        %1093 = vmatmul.bf16.gmra.mxu0 %v690
        %v1094 = vpop.f32.mrf.mxu0
        %v1095 = vadd.f32 %v926, %v1094
        %v1096 = vpop.f32.mrf.mxu0
        %v1097 = vadd.f32 %v928, %v1096
        %1098 = vmatmul.bf16.gmra.mxu0 %v692
        %v1099 = vpop.f32.mrf.mxu0
        %v1100 = vadd.f32 %v931, %v1099
        %v1101 = vpop.f32.mrf.mxu0
        %v1102 = vadd.f32 %v933, %v1101
        %1103 = vmatmul.bf16.gmra.mxu0 %v694
        %v1104 = vpop.f32.mrf.mxu0
        %v1105 = vadd.f32 %v936, %v1104
        %v1106 = vpop.f32.mrf.mxu0
        %v1107 = vadd.f32 %v938, %v1106
        %1108 = vmatmul.bf16.gmra.mxu0 %v696
        %v1109 = vpop.f32.mrf.mxu0
        %v1110 = vadd.f32 %v941, %v1109
        %v1111 = vpop.f32.mrf.mxu0
        %v1112 = vadd.f32 %v943, %v1111
        %1113 = vmatmul.bf16.gmra.mxu0 %v698
        %v1114 = vpop.f32.mrf.mxu0
        %v1115 = vadd.f32 %v946, %v1114
        %v1116 = vpop.f32.mrf.mxu0
        %v1117 = vadd.f32 %v948, %v1116
        %1118 = vmatmul.bf16.gmra.mxu0 %v700
        %v1119 = vpop.f32.mrf.mxu0
        %v1120 = vadd.f32 %v951, %v1119
        %v1121 = vpop.f32.mrf.mxu0
        %v1122 = vadd.f32 %v953, %v1121
        %1123 = vmatmul.bf16.gmra.mxu0 %v702
        %v1124 = vpop.f32.mrf.mxu0
        %v1125 = vadd.f32 %v956, %v1124
        %v1126 = vpop.f32.mrf.mxu0
        %v1127 = vadd.f32 %v958, %v1126
        %1128 = vmatmul.bf16.gmra.mxu0 %v704
        %v1129 = vpop.f32.mrf.mxu0
        %v1130 = vadd.f32 %v961, %v1129
        %v1131 = vpop.f32.mrf.mxu0
        %v1132 = vadd.f32 %v963, %v1131
        %1133 = vmatmul.bf16.gmra.mxu0 %v706
        %v1134 = vpop.f32.mrf.mxu0
        %v1135 = vadd.f32 %v966, %v1134
        %v1136 = vpop.f32.mrf.mxu0
        %v1137 = vadd.f32 %v968, %v1136
        %1138 = vmatmul.bf16.gmra.mxu0 %v708
        %v1139 = vpop.f32.mrf.mxu0
        %v1140 = vadd.f32 %v971, %v1139
        %v1141 = vpop.f32.mrf.mxu0
        %v1142 = vadd.f32 %v973, %v1141
        %1143 = vmatmul.bf16.gmra.mxu0 %v710
        %v1144 = vpop.f32.mrf.mxu0
        %v1145 = vadd.f32 %v976, %v1144
        %v1146 = vpop.f32.mrf.mxu0
        %v1147 = vadd.f32 %v978, %v1146
        %1148 = vmatmul.bf16.gmra.mxu0 %v712
        %v1149 = vpop.f32.mrf.mxu0
        %v1150 = vadd.f32 %v981, %v1149
        %v1151 = vpop.f32.mrf.mxu0
        %v1152 = vadd.f32 %v983, %v1151
        %1153 = vmatmul.bf16.gmra.mxu0 %v714
        %v1154 = vpop.f32.mrf.mxu0
        %v1155 = vadd.f32 %v986, %v1154
        %v1156 = vpop.f32.mrf.mxu0
        %v1157 = vadd.f32 %v988, %v1156
        %1158 = vmatmul.bf16.gmra.mxu0 %v716
        %v1159 = vpop.f32.mrf.mxu0
        %v1160 = vadd.f32 %v991, %v1159
        %v1161 = vpop.f32.mrf.mxu0
        %v1162 = vadd.f32 %v993, %v1161
        %1163 = vmatmul.bf16.gmra.mxu0 %v718
        %v1164 = vpop.f32.mrf.mxu0
        %v1165 = vadd.f32 %v996, %v1164
        %v1166 = vpop.f32.mrf.mxu0
        %v1167 = vadd.f32 %v998, %v1166
        %1168 = vmatmul.bf16.gmra.mxu0 %v720
        %v1169 = vpop.f32.mrf.mxu0
        %v1170 = vadd.f32 %v1001, %v1169
        %v1171 = vpop.f32.mrf.mxu0
        %v1172 = vadd.f32 %v1003, %v1171
        %1173 = vmatmul.bf16.gmra.mxu0 %v722
        %v1174 = vpop.f32.mrf.mxu0
        %v1175 = vadd.f32 %v1006, %v1174
        %v1176 = vpop.f32.mrf.mxu0
        %v1177 = vadd.f32 %v1008, %v1176
        %1178 = vmatmul.bf16.gmra.mxu0 %v724
        %v1179 = vpop.f32.mrf.mxu0
        %v1180 = vadd.f32 %v1011, %v1179
        %v1181 = vpop.f32.mrf.mxu0
        %v1182 = vadd.f32 %v1013, %v1181
        %1183 = vmatmul.bf16.gmra.mxu0 %v726
        %v1184 = vpop.f32.mrf.mxu0
        %v1185 = vadd.f32 %v1016, %v1184
        %v1186 = vpop.f32.mrf.mxu0
        %v1187 = vadd.f32 %v1018, %v1186
        %1188 = vmatmul.bf16.gmra.mxu0 %v728
        %v1189 = vpop.f32.mrf.mxu0
        %v1190 = vadd.f32 %v1021, %v1189
        %v1191 = vpop.f32.mrf.mxu0
        %v1192 = vadd.f32 %v1023, %v1191
        %1193 = vmatmul.bf16.gmra.mxu0 %v730
        %v1194 = vpop.f32.mrf.mxu0
        %v1195 = vadd.f32 %v1026, %v1194
        %v1196 = vpop.f32.mrf.mxu0
        %v1197 = vadd.f32 %v1028, %v1196
        %1198 = vmatmul.bf16.gmra.mxu0 %v732
        %v1199 = vpop.f32.mrf.mxu0
        %v1200 = vadd.f32 %v1031, %v1199
        %v1201 = vpop.f32.mrf.mxu0
        %v1202 = vadd.f32 %v1033, %v1201
        %1203 = vmatmul.bf16.gmra.mxu0 %v734
        %v1204 = vpop.f32.mrf.mxu0
        %v1205 = vadd.f32 %v1036, %v1204
        %v1206 = vpop.f32.mrf.mxu0
        %v1207 = vadd.f32 %v1038, %v1206
        %1208 = vmatmul.bf16.gmra.mxu0 %v736
        %v1209 = vpop.f32.mrf.mxu0
        %v1210 = vadd.f32 %v1041, %v1209
        %v1211 = vpop.f32.mrf.mxu0
        %v1212 = vadd.f32 %v1043, %v1211
        %1213 = vmatmul.bf16.gmra.mxu0 %v738
        %v1214 = vpop.f32.mrf.mxu0
        %v1215 = vadd.f32 %v1046, %v1214
        %v1216 = vpop.f32.mrf.mxu0
        %v1217 = vadd.f32 %v1048, %v1216
        %1218 = vmatmul.bf16.gmra.mxu0 %v740
        %v1219 = vpop.f32.mrf.mxu0
        %v1220 = vadd.f32 %v1051, %v1219
        %v1221 = vpop.f32.mrf.mxu0
        %v1222 = vadd.f32 %v1053, %v1221
        %1223 = vmatmul.bf16.gmra.mxu0 %v742
        %v1224 = vpop.f32.mrf.mxu0
        %v1225 = vadd.f32 %v1056, %v1224
        %v1226 = vpop.f32.mrf.mxu0
        %v1227 = vadd.f32 %v1058, %v1226
        %1228 = vmatmul.bf16.gmra.mxu0 %v744
        %v1229 = vpop.f32.mrf.mxu0
        %v1230 = vadd.f32 %v1061, %v1229
        %v1231 = vpop.f32.mrf.mxu0
        %v1232 = vadd.f32 %v1063, %v1231
        %1233 = vmatmul.bf16.gmra.mxu0 %v746
        %v1234 = vpop.f32.mrf.mxu0
        %v1235 = vadd.f32 %v1066, %v1234
        %v1236 = vpop.f32.mrf.mxu0
        %v1237 = vadd.f32 %v1068, %v1236
        %1238 = vmatmul.bf16.gmra.mxu0 %v748
        %v1239 = vpop.f32.mrf.mxu0
        %v1240 = vadd.f32 %v1071, %v1239
        %v1241 = vpop.f32.mrf.mxu0
        %v1242 = vadd.f32 %v1073, %v1241
        %1243 = vmatmul.bf16.gmra.mxu0 %v750
        %v1244 = vpop.f32.mrf.mxu0
        %v1245 = vadd.f32 %v1076, %v1244
        %v1246 = vpop.f32.mrf.mxu0
        %v1247 = vadd.f32 %v1078, %v1246
        %1248 = vdwg.mxu0
        %v1249 = vadd.f32 %v335, %v1090
        %v1250 = vadd.f32 %v336, %v1092
        %v1251 = vadd.f32 %v337, %v1095
        %v1252 = vadd.f32 %v338, %v1097
        %v1253 = vadd.f32 %v339, %v1100
        %v1254 = vadd.f32 %v340, %v1102
        %v1255 = vadd.f32 %v341, %v1105
        %v1256 = vadd.f32 %v342, %v1107
        %v1257 = vadd.f32 %v343, %v1110
        %v1258 = vadd.f32 %v344, %v1112
        %v1259 = vadd.f32 %v345, %v1115
        %v1260 = vadd.f32 %v346, %v1117
        %v1261 = vadd.f32 %v347, %v1120
        %v1262 = vadd.f32 %v348, %v1122
        %v1263 = vadd.f32 %v349, %v1125
        %v1264 = vadd.f32 %v350, %v1127
        %v1265 = vadd.f32 %v351, %v1130
        %v1266 = vadd.f32 %v352, %v1132
        %v1267 = vadd.f32 %v353, %v1135
        %v1268 = vadd.f32 %v354, %v1137
        %v1269 = vadd.f32 %v355, %v1140
        %v1270 = vadd.f32 %v356, %v1142
        %v1271 = vadd.f32 %v357, %v1145
        %v1272 = vadd.f32 %v358, %v1147
        %v1273 = vadd.f32 %v359, %v1150
        %v1274 = vadd.f32 %v360, %v1152
        %v1275 = vadd.f32 %v361, %v1155
        %v1276 = vadd.f32 %v362, %v1157
        %v1277 = vadd.f32 %v363, %v1160
        %v1278 = vadd.f32 %v364, %v1162
        %v1279 = vadd.f32 %v365, %v1165
        %v1280 = vadd.f32 %v366, %v1167
        %v1281 = vadd.f32 %v367, %v1170
        %v1282 = vadd.f32 %v368, %v1172
        %v1283 = vadd.f32 %v369, %v1175
        %v1284 = vadd.f32 %v370, %v1177
        %v1285 = vadd.f32 %v371, %v1180
        %v1286 = vadd.f32 %v372, %v1182
        %v1287 = vadd.f32 %v373, %v1185
        %v1288 = vadd.f32 %v374, %v1187
        %v1289 = vadd.f32 %v375, %v1190
        %v1290 = vadd.f32 %v376, %v1192
        %v1291 = vadd.f32 %v377, %v1195
        %v1292 = vadd.f32 %v378, %v1197
        %v1293 = vadd.f32 %v379, %v1200
        %v1294 = vadd.f32 %v380, %v1202
        %v1295 = vadd.f32 %v381, %v1205
        %v1296 = vadd.f32 %v382, %v1207
        %v1297 = vadd.f32 %v383, %v1210
        %v1298 = vadd.f32 %v384, %v1212
        %v1299 = vadd.f32 %v385, %v1215
        %v1300 = vadd.f32 %v386, %v1217
        %v1301 = vadd.f32 %v387, %v1220
        %v1302 = vadd.f32 %v388, %v1222
        %v1303 = vadd.f32 %v389, %v1225
        %v1304 = vadd.f32 %v390, %v1227
        %v1305 = vadd.f32 %v391, %v1230
        %v1306 = vadd.f32 %v392, %v1232
        %v1307 = vadd.f32 %v393, %v1235
        %v1308 = vadd.f32 %v394, %v1237
        %v1309 = vadd.f32 %v395, %v1240
        %v1310 = vadd.f32 %v396, %v1242
        %v1311 = vadd.f32 %v397, %v1245
        %v1312 = vadd.f32 %v398, %v1247
        %1313 = vst [vmem:[#allocation2] sm:$0xff] %v1249
        %1314 = vst [vmem:[#allocation2 + $0x8] sm:$0xff] %v1250
        %1315 = vst [vmem:[#allocation2 + $0x10] sm:$0xff] %v1251
        %1316 = vst [vmem:[#allocation2 + $0x18] sm:$0xff] %v1252
        %1317 = vst [vmem:[#allocation2 + $0x20] sm:$0xff] %v1253
        %1318 = vst [vmem:[#allocation2 + $0x28] sm:$0xff] %v1254
        %1319 = vst [vmem:[#allocation2 + $0x30] sm:$0xff] %v1255
        %1320 = vst [vmem:[#allocation2 + $0x38] sm:$0xff] %v1256
        %1321 = vst [vmem:[#allocation2 + $0x40] sm:$0xff] %v1257
        %1322 = vst [vmem:[#allocation2 + $0x48] sm:$0xff] %v1258
        %1323 = vst [vmem:[#allocation2 + $0x50] sm:$0xff] %v1259
        %1324 = vst [vmem:[#allocation2 + $0x58] sm:$0xff] %v1260
        %1325 = vst [vmem:[#allocation2 + $0x60] sm:$0xff] %v1261
        %1326 = vst [vmem:[#allocation2 + $0x68] sm:$0xff] %v1262
        %1327 = vst [vmem:[#allocation2 + $0x70] sm:$0xff] %v1263
        %1328 = vst [vmem:[#allocation2 + $0x78] sm:$0xff] %v1264
        %1329 = vst [vmem:[#allocation2 + $0x80] sm:$0xff] %v1265
        %1330 = vst [vmem:[#allocation2 + $0x88] sm:$0xff] %v1266
        %1331 = vst [vmem:[#allocation2 + $0x90] sm:$0xff] %v1267
        %1332 = vst [vmem:[#allocation2 + $0x98] sm:$0xff] %v1268
        %1333 = vst [vmem:[#allocation2 + $0xa0] sm:$0xff] %v1269
        %1334 = vst [vmem:[#allocation2 + $0xa8] sm:$0xff] %v1270
        %1335 = vst [vmem:[#allocation2 + $0xb0] sm:$0xff] %v1271
        %1336 = vst [vmem:[#allocation2 + $0xb8] sm:$0xff] %v1272
        %1337 = vst [vmem:[#allocation2 + $0xc0] sm:$0xff] %v1273
        %1338 = vst [vmem:[#allocation2 + $0xc8] sm:$0xff] %v1274
        %1339 = vst [vmem:[#allocation2 + $0xd0] sm:$0xff] %v1275
        %1340 = vst [vmem:[#allocation2 + $0xd8] sm:$0xff] %v1276
        %1341 = vst [vmem:[#allocation2 + $0xe0] sm:$0xff] %v1277
        %1342 = vst [vmem:[#allocation2 + $0xe8] sm:$0xff] %v1278
        %1343 = vst [vmem:[#allocation2 + $0xf0] sm:$0xff] %v1279
        %1344 = vst [vmem:[#allocation2 + $0xf8] sm:$0xff] %v1280
        %1345 = vst [vmem:[#allocation2 + $0x100] sm:$0xff] %v1281
        %1346 = vst [vmem:[#allocation2 + $0x108] sm:$0xff] %v1282
        %1347 = vst [vmem:[#allocation2 + $0x110] sm:$0xff] %v1283
        %1348 = vst [vmem:[#allocation2 + $0x118] sm:$0xff] %v1284
        %1349 = vst [vmem:[#allocation2 + $0x120] sm:$0xff] %v1285
        %1350 = vst [vmem:[#allocation2 + $0x128] sm:$0xff] %v1286
        %1351 = vst [vmem:[#allocation2 + $0x130] sm:$0xff] %v1287
        %1352 = vst [vmem:[#allocation2 + $0x138] sm:$0xff] %v1288
        %1353 = vst [vmem:[#allocation2 + $0x140] sm:$0xff] %v1289
        %1354 = vst [vmem:[#allocation2 + $0x148] sm:$0xff] %v1290
        %1355 = vst [vmem:[#allocation2 + $0x150] sm:$0xff] %v1291
        %1356 = vst [vmem:[#allocation2 + $0x158] sm:$0xff] %v1292
        %1357 = vst [vmem:[#allocation2 + $0x160] sm:$0xff] %v1293
        %1358 = vst [vmem:[#allocation2 + $0x168] sm:$0xff] %v1294
        %1359 = vst [vmem:[#allocation2 + $0x170] sm:$0xff] %v1295
        %1360 = vst [vmem:[#allocation2 + $0x178] sm:$0xff] %v1296
        %1361 = vst [vmem:[#allocation2 + $0x180] sm:$0xff] %v1297
        %1362 = vst [vmem:[#allocation2 + $0x188] sm:$0xff] %v1298
        %1363 = vst [vmem:[#allocation2 + $0x190] sm:$0xff] %v1299
        %1364 = vst [vmem:[#allocation2 + $0x198] sm:$0xff] %v1300
        %1365 = vst [vmem:[#allocation2 + $0x1a0] sm:$0xff] %v1301
        %1366 = vst [vmem:[#allocation2 + $0x1a8] sm:$0xff] %v1302
        %1367 = vst [vmem:[#allocation2 + $0x1b0] sm:$0xff] %v1303
        %1368 = vst [vmem:[#allocation2 + $0x1b8] sm:$0xff] %v1304
        %1369 = vst [vmem:[#allocation2 + $0x1c0] sm:$0xff] %v1305
        %1370 = vst [vmem:[#allocation2 + $0x1c8] sm:$0xff] %v1306
        %1371 = vst [vmem:[#allocation2 + $0x1d0] sm:$0xff] %v1307
        %1372 = vst [vmem:[#allocation2 + $0x1d8] sm:$0xff] %v1308
        %1373 = vst [vmem:[#allocation2 + $0x1e0] sm:$0xff] %v1309
        %1374 = vst [vmem:[#allocation2 + $0x1e8] sm:$0xff] %v1310
        %1375 = vst [vmem:[#allocation2 + $0x1f0] sm:$0xff] %v1311
        %1376 = vst [vmem:[#allocation2 + $0x1f8] sm:$0xff] %v1312
        // Predicated region
        $region45: #{tpu_custom_call.1} parent=31 // pred_check
          %p1377 = pneg %p263
        $region46: #{tpu_custom_call.1} parent=31 // pred_check_branch
          %1379 = sbr.rel (%p1377) target = $region48
        $region47: #{tpu_custom_call.1} parent=31 // pred_region
          %v1380 = vld [vmem:[#allocation2] sm:$0xff]
          %v1381 = vld [vmem:[#allocation2 + $0x8] sm:$0xff]
          %v1382 = vld [vmem:[#allocation2 + $0x10] sm:$0xff]
          %v1383 = vld [vmem:[#allocation2 + $0x18] sm:$0xff]
          %v1384 = vld [vmem:[#allocation2 + $0x20] sm:$0xff]
          %v1385 = vld [vmem:[#allocation2 + $0x28] sm:$0xff]
          %v1386 = vld [vmem:[#allocation2 + $0x30] sm:$0xff]
          %v1387 = vld [vmem:[#allocation2 + $0x38] sm:$0xff]
          %v1388 = vld [vmem:[#allocation2 + $0x40] sm:$0xff]
          %v1389 = vld [vmem:[#allocation2 + $0x48] sm:$0xff]
          %v1390 = vld [vmem:[#allocation2 + $0x50] sm:$0xff]
          %v1391 = vld [vmem:[#allocation2 + $0x58] sm:$0xff]
          %v1392 = vld [vmem:[#allocation2 + $0x60] sm:$0xff]
          %v1393 = vld [vmem:[#allocation2 + $0x68] sm:$0xff]
          %v1394 = vld [vmem:[#allocation2 + $0x70] sm:$0xff]
          %v1395 = vld [vmem:[#allocation2 + $0x78] sm:$0xff]
          %v1396 = vld [vmem:[#allocation2 + $0x80] sm:$0xff]
          %v1397 = vld [vmem:[#allocation2 + $0x88] sm:$0xff]
          %v1398 = vld [vmem:[#allocation2 + $0x90] sm:$0xff]
          %v1399 = vld [vmem:[#allocation2 + $0x98] sm:$0xff]
          %v1400 = vld [vmem:[#allocation2 + $0xa0] sm:$0xff]
          %v1401 = vld [vmem:[#allocation2 + $0xa8] sm:$0xff]
          %v1402 = vld [vmem:[#allocation2 + $0xb0] sm:$0xff]
          %v1403 = vld [vmem:[#allocation2 + $0xb8] sm:$0xff]
          %v1404 = vld [vmem:[#allocation2 + $0xc0] sm:$0xff]
          %v1405 = vld [vmem:[#allocation2 + $0xc8] sm:$0xff]
          %v1406 = vld [vmem:[#allocation2 + $0xd0] sm:$0xff]
          %v1407 = vld [vmem:[#allocation2 + $0xd8] sm:$0xff]
          %v1408 = vld [vmem:[#allocation2 + $0xe0] sm:$0xff]
          %v1409 = vld [vmem:[#allocation2 + $0xe8] sm:$0xff]
          %v1410 = vld [vmem:[#allocation2 + $0xf0] sm:$0xff]
          %v1411 = vld [vmem:[#allocation2 + $0xf8] sm:$0xff]
          %v1412 = vld [vmem:[#allocation2 + $0x100] sm:$0xff]
          %v1413 = vld [vmem:[#allocation2 + $0x108] sm:$0xff]
          %v1414 = vld [vmem:[#allocation2 + $0x110] sm:$0xff]
          %v1415 = vld [vmem:[#allocation2 + $0x118] sm:$0xff]
          %v1416 = vld [vmem:[#allocation2 + $0x120] sm:$0xff]
          %v1417 = vld [vmem:[#allocation2 + $0x128] sm:$0xff]
          %v1418 = vld [vmem:[#allocation2 + $0x130] sm:$0xff]
          %v1419 = vld [vmem:[#allocation2 + $0x138] sm:$0xff]
          %v1420 = vld [vmem:[#allocation2 + $0x140] sm:$0xff]
          %v1421 = vld [vmem:[#allocation2 + $0x148] sm:$0xff]
          %v1422 = vld [vmem:[#allocation2 + $0x150] sm:$0xff]
          %v1423 = vld [vmem:[#allocation2 + $0x158] sm:$0xff]
          %v1424 = vld [vmem:[#allocation2 + $0x160] sm:$0xff]
          %v1425 = vld [vmem:[#allocation2 + $0x168] sm:$0xff]
          %v1426 = vld [vmem:[#allocation2 + $0x170] sm:$0xff]
          %v1427 = vld [vmem:[#allocation2 + $0x178] sm:$0xff]
          %v1428 = vld [vmem:[#allocation2 + $0x180] sm:$0xff]
          %v1429 = vld [vmem:[#allocation2 + $0x188] sm:$0xff]
          %v1430 = vld [vmem:[#allocation2 + $0x190] sm:$0xff]
          %v1431 = vld [vmem:[#allocation2 + $0x198] sm:$0xff]
          %v1432 = vld [vmem:[#allocation2 + $0x1a0] sm:$0xff]
          %v1433 = vld [vmem:[#allocation2 + $0x1a8] sm:$0xff]
          %v1434 = vld [vmem:[#allocation2 + $0x1b0] sm:$0xff]
          %v1435 = vld [vmem:[#allocation2 + $0x1b8] sm:$0xff]
          %v1436 = vld [vmem:[#allocation2 + $0x1c0] sm:$0xff]
          %v1437 = vld [vmem:[#allocation2 + $0x1c8] sm:$0xff]
          %v1438 = vld [vmem:[#allocation2 + $0x1d0] sm:$0xff]
          %v1439 = vld [vmem:[#allocation2 + $0x1d8] sm:$0xff]
          %v1440 = vld [vmem:[#allocation2 + $0x1e0] sm:$0xff]
          %v1441 = vld [vmem:[#allocation2 + $0x1e8] sm:$0xff]
          %v1442 = vld [vmem:[#allocation2 + $0x1f0] sm:$0xff]
          %v1443 = vld [vmem:[#allocation2 + $0x1f8] sm:$0xff]
          %v1444 = vmax.f32 %v1380, 0.0
          %v1445 = vmax.f32 %v1381, 0.0
          %v1446 = vmax.f32 %v1382, 0.0
          %v1447 = vmax.f32 %v1383, 0.0
          %v1448 = vmax.f32 %v1384, 0.0
          %v1449 = vmax.f32 %v1385, 0.0
          %v1450 = vmax.f32 %v1386, 0.0
          %v1451 = vmax.f32 %v1387, 0.0
          %v1452 = vmax.f32 %v1388, 0.0
          %v1453 = vmax.f32 %v1389, 0.0
          %v1454 = vmax.f32 %v1390, 0.0
          %v1455 = vmax.f32 %v1391, 0.0
          %v1456 = vmax.f32 %v1392, 0.0
          %v1457 = vmax.f32 %v1393, 0.0
          %v1458 = vmax.f32 %v1394, 0.0
          %v1459 = vmax.f32 %v1395, 0.0
          %v1460 = vmax.f32 %v1396, 0.0
          %v1461 = vmax.f32 %v1397, 0.0
          %v1462 = vmax.f32 %v1398, 0.0
          %v1463 = vmax.f32 %v1399, 0.0
          %v1464 = vmax.f32 %v1400, 0.0
          %v1465 = vmax.f32 %v1401, 0.0
          %v1466 = vmax.f32 %v1402, 0.0
          %v1467 = vmax.f32 %v1403, 0.0
          %v1468 = vmax.f32 %v1404, 0.0
          %v1469 = vmax.f32 %v1405, 0.0
          %v1470 = vmax.f32 %v1406, 0.0
          %v1471 = vmax.f32 %v1407, 0.0
          %v1472 = vmax.f32 %v1408, 0.0
          %v1473 = vmax.f32 %v1409, 0.0
          %v1474 = vmax.f32 %v1410, 0.0
          %v1475 = vmax.f32 %v1411, 0.0
          %v1476 = vmax.f32 %v1412, 0.0
          %v1477 = vmax.f32 %v1413, 0.0
          %v1478 = vmax.f32 %v1414, 0.0
          %v1479 = vmax.f32 %v1415, 0.0
          %v1480 = vmax.f32 %v1416, 0.0
          %v1481 = vmax.f32 %v1417, 0.0
          %v1482 = vmax.f32 %v1418, 0.0
          %v1483 = vmax.f32 %v1419, 0.0
          %v1484 = vmax.f32 %v1420, 0.0
          %v1485 = vmax.f32 %v1421, 0.0
          %v1486 = vmax.f32 %v1422, 0.0
          %v1487 = vmax.f32 %v1423, 0.0
          %v1488 = vmax.f32 %v1424, 0.0
          %v1489 = vmax.f32 %v1425, 0.0
          %v1490 = vmax.f32 %v1426, 0.0
          %v1491 = vmax.f32 %v1427, 0.0
          %v1492 = vmax.f32 %v1428, 0.0
          %v1493 = vmax.f32 %v1429, 0.0
          %v1494 = vmax.f32 %v1430, 0.0
          %v1495 = vmax.f32 %v1431, 0.0
          %v1496 = vmax.f32 %v1432, 0.0
          %v1497 = vmax.f32 %v1433, 0.0
          %v1498 = vmax.f32 %v1434, 0.0
          %v1499 = vmax.f32 %v1435, 0.0
          %v1500 = vmax.f32 %v1436, 0.0
          %v1501 = vmax.f32 %v1437, 0.0
          %v1502 = vmax.f32 %v1438, 0.0
          %v1503 = vmax.f32 %v1439, 0.0
          %v1504 = vmax.f32 %v1440, 0.0
          %v1505 = vmax.f32 %v1441, 0.0
          %v1506 = vmax.f32 %v1442, 0.0
          %v1507 = vmax.f32 %v1443, 0.0
          %v1508 = vpack.c.bf16 %v1444, %v1444
          %v1509 = vpack.c.bf16 %v1445, %v1445
          %v1510 = vpack.c.bf16 %v1446, %v1446
          %v1511 = vpack.c.bf16 %v1447, %v1447
          %v1512 = vpack.c.bf16 %v1448, %v1448
          %v1513 = vpack.c.bf16 %v1449, %v1449
          %v1514 = vpack.c.bf16 %v1450, %v1450
          %v1515 = vpack.c.bf16 %v1451, %v1451
          %v1516 = vpack.c.bf16 %v1452, %v1452
          %v1517 = vpack.c.bf16 %v1453, %v1453
          %v1518 = vpack.c.bf16 %v1454, %v1454
          %v1519 = vpack.c.bf16 %v1455, %v1455
          %v1520 = vpack.c.bf16 %v1456, %v1456
          %v1521 = vpack.c.bf16 %v1457, %v1457
          %v1522 = vpack.c.bf16 %v1458, %v1458
          %v1523 = vpack.c.bf16 %v1459, %v1459
          %v1524 = vpack.c.bf16 %v1460, %v1460
          %v1525 = vpack.c.bf16 %v1461, %v1461
          %v1526 = vpack.c.bf16 %v1462, %v1462
          %v1527 = vpack.c.bf16 %v1463, %v1463
          %v1528 = vpack.c.bf16 %v1464, %v1464
          %v1529 = vpack.c.bf16 %v1465, %v1465
          %v1530 = vpack.c.bf16 %v1466, %v1466
          %v1531 = vpack.c.bf16 %v1467, %v1467
          %v1532 = vpack.c.bf16 %v1468, %v1468
          %v1533 = vpack.c.bf16 %v1469, %v1469
          %v1534 = vpack.c.bf16 %v1470, %v1470
          %v1535 = vpack.c.bf16 %v1471, %v1471
          %v1536 = vpack.c.bf16 %v1472, %v1472
          %v1537 = vpack.c.bf16 %v1473, %v1473
          %v1538 = vpack.c.bf16 %v1474, %v1474
          %v1539 = vpack.c.bf16 %v1475, %v1475
          %v1540 = vpack.c.bf16 %v1476, %v1476
          %v1541 = vpack.c.bf16 %v1477, %v1477
          %v1542 = vpack.c.bf16 %v1478, %v1478
          %v1543 = vpack.c.bf16 %v1479, %v1479
          %v1544 = vpack.c.bf16 %v1480, %v1480
          %v1545 = vpack.c.bf16 %v1481, %v1481
          %v1546 = vpack.c.bf16 %v1482, %v1482
          %v1547 = vpack.c.bf16 %v1483, %v1483
          %v1548 = vpack.c.bf16 %v1484, %v1484
          %v1549 = vpack.c.bf16 %v1485, %v1485
          %v1550 = vpack.c.bf16 %v1486, %v1486
          %v1551 = vpack.c.bf16 %v1487, %v1487
          %v1552 = vpack.c.bf16 %v1488, %v1488
          %v1553 = vpack.c.bf16 %v1489, %v1489
          %v1554 = vpack.c.bf16 %v1490, %v1490
          %v1555 = vpack.c.bf16 %v1491, %v1491
          %v1556 = vpack.c.bf16 %v1492, %v1492
          %v1557 = vpack.c.bf16 %v1493, %v1493
          %v1558 = vpack.c.bf16 %v1494, %v1494
          %v1559 = vpack.c.bf16 %v1495, %v1495
          %v1560 = vpack.c.bf16 %v1496, %v1496
          %v1561 = vpack.c.bf16 %v1497, %v1497
          %v1562 = vpack.c.bf16 %v1498, %v1498
          %v1563 = vpack.c.bf16 %v1499, %v1499
          %v1564 = vpack.c.bf16 %v1500, %v1500
          %v1565 = vpack.c.bf16 %v1501, %v1501
          %v1566 = vpack.c.bf16 %v1502, %v1502
          %v1567 = vpack.c.bf16 %v1503, %v1503
          %v1568 = vpack.c.bf16 %v1504, %v1504
          %v1569 = vpack.c.bf16 %v1505, %v1505
          %v1570 = vpack.c.bf16 %v1506, %v1506
          %v1571 = vpack.c.bf16 %v1507, %v1507
          %1572 = vst [vmem:[%s255] sm:$0xf] %v1508
          %1573 = vst [vmem:[%s255 + $0x4] sm:$0xf] %v1509
          %1574 = vst [vmem:[%s255 + $0x8] sm:$0xf] %v1510
          %1575 = vst [vmem:[%s255 + $0xc] sm:$0xf] %v1511
          %1576 = vst [vmem:[%s255 + $0x10] sm:$0xf] %v1512
          %1577 = vst [vmem:[%s255 + $0x14] sm:$0xf] %v1513
          %1578 = vst [vmem:[%s255 + $0x18] sm:$0xf] %v1514
          %1579 = vst [vmem:[%s255 + $0x1c] sm:$0xf] %v1515
          %1580 = vst [vmem:[%s255 + $0x20] sm:$0xf] %v1516
          %1581 = vst [vmem:[%s255 + $0x24] sm:$0xf] %v1517
          %1582 = vst [vmem:[%s255 + $0x28] sm:$0xf] %v1518
          %1583 = vst [vmem:[%s255 + $0x2c] sm:$0xf] %v1519
          %1584 = vst [vmem:[%s255 + $0x30] sm:$0xf] %v1520
          %1585 = vst [vmem:[%s255 + $0x34] sm:$0xf] %v1521
          %1586 = vst [vmem:[%s255 + $0x38] sm:$0xf] %v1522
          %1587 = vst [vmem:[%s255 + $0x3c] sm:$0xf] %v1523
          %1588 = vst [vmem:[%s255 + $0x40] sm:$0xf] %v1524
          %1589 = vst [vmem:[%s255 + $0x44] sm:$0xf] %v1525
          %1590 = vst [vmem:[%s255 + $0x48] sm:$0xf] %v1526
          %1591 = vst [vmem:[%s255 + $0x4c] sm:$0xf] %v1527
          %1592 = vst [vmem:[%s255 + $0x50] sm:$0xf] %v1528
          %1593 = vst [vmem:[%s255 + $0x54] sm:$0xf] %v1529
          %1594 = vst [vmem:[%s255 + $0x58] sm:$0xf] %v1530
          %1595 = vst [vmem:[%s255 + $0x5c] sm:$0xf] %v1531
          %1596 = vst [vmem:[%s255 + $0x60] sm:$0xf] %v1532
          %1597 = vst [vmem:[%s255 + $0x64] sm:$0xf] %v1533
          %1598 = vst [vmem:[%s255 + $0x68] sm:$0xf] %v1534
          %1599 = vst [vmem:[%s255 + $0x6c] sm:$0xf] %v1535
          %1600 = vst [vmem:[%s255 + $0x70] sm:$0xf] %v1536
          %1601 = vst [vmem:[%s255 + $0x74] sm:$0xf] %v1537
          %1602 = vst [vmem:[%s255 + $0x78] sm:$0xf] %v1538
          %1603 = vst [vmem:[%s255 + $0x7c] sm:$0xf] %v1539
          %1604 = vst [vmem:[%s255 + $0x80] sm:$0xf] %v1540
          %1605 = vst [vmem:[%s255 + $0x84] sm:$0xf] %v1541
          %1606 = vst [vmem:[%s255 + $0x88] sm:$0xf] %v1542
          %1607 = vst [vmem:[%s255 + $0x8c] sm:$0xf] %v1543
          %1608 = vst [vmem:[%s255 + $0x90] sm:$0xf] %v1544
          %1609 = vst [vmem:[%s255 + $0x94] sm:$0xf] %v1545
          %1610 = vst [vmem:[%s255 + $0x98] sm:$0xf] %v1546
          %1611 = vst [vmem:[%s255 + $0x9c] sm:$0xf] %v1547
          %1612 = vst [vmem:[%s255 + $0xa0] sm:$0xf] %v1548
          %1613 = vst [vmem:[%s255 + $0xa4] sm:$0xf] %v1549
          %1614 = vst [vmem:[%s255 + $0xa8] sm:$0xf] %v1550
          %1615 = vst [vmem:[%s255 + $0xac] sm:$0xf] %v1551
          %1616 = vst [vmem:[%s255 + $0xb0] sm:$0xf] %v1552
          %1617 = vst [vmem:[%s255 + $0xb4] sm:$0xf] %v1553
          %1618 = vst [vmem:[%s255 + $0xb8] sm:$0xf] %v1554
          %1619 = vst [vmem:[%s255 + $0xbc] sm:$0xf] %v1555
          %1620 = vst [vmem:[%s255 + $0xc0] sm:$0xf] %v1556
          %1621 = vst [vmem:[%s255 + $0xc4] sm:$0xf] %v1557
          %1622 = vst [vmem:[%s255 + $0xc8] sm:$0xf] %v1558
          %1623 = vst [vmem:[%s255 + $0xcc] sm:$0xf] %v1559
          %1624 = vst [vmem:[%s255 + $0xd0] sm:$0xf] %v1560
          %1625 = vst [vmem:[%s255 + $0xd4] sm:$0xf] %v1561
          %1626 = vst [vmem:[%s255 + $0xd8] sm:$0xf] %v1562
          %1627 = vst [vmem:[%s255 + $0xdc] sm:$0xf] %v1563
          %1628 = vst [vmem:[%s255 + $0xe0] sm:$0xf] %v1564
          %1629 = vst [vmem:[%s255 + $0xe4] sm:$0xf] %v1565
          %1630 = vst [vmem:[%s255 + $0xe8] sm:$0xf] %v1566
          %1631 = vst [vmem:[%s255 + $0xec] sm:$0xf] %v1567
          %1632 = vst [vmem:[%s255 + $0xf0] sm:$0xf] %v1568
          %1633 = vst [vmem:[%s255 + $0xf4] sm:$0xf] %v1569
          %1634 = vst [vmem:[%s255 + $0xf8] sm:$0xf] %v1570
          %1635 = vst [vmem:[%s255 + $0xfc] sm:$0xf] %v1571
        $region48: #{tpu_custom_call.1} parent=31 // pred_fallthru
          _
        %s1636 = sand.u32 %s132, 1
        %s1637 = scalar_lea.sflag [#allocation5], %s1636
        %s1638 = sand.u32 %s132, 1
        %s1639 = smul.addr %s1638, 256
        %s1640 = scalar_lea.vmem [#allocation8], %s1639
        // Predicated region
        $region49: #{tpu_custom_call.1} parent=31 // pred_check
          %p1641 = pneg %p142
        $region50: #{tpu_custom_call.1} parent=31 // pred_check_branch
          %1643 = sbr.rel (%p1641) target = $region52
        $region51: #{tpu_custom_call.1} parent=31 // pred_region
          %s1644 = smul.u32 64, %s26
          %1646 = vsyncadd %s1637, 0
          %s1647 = sadd.s32 %s27, %s1644
          %s1648 = smul.addr %s1647, 4
          %s1649 = scalar_lea.hbm %s3, %s1648
          %s1650 = sshll.u32 %s1640, 4
          %s1651 = int_to_ptr.vmem [resolvable:$true] %s1650
          %s1652 = sshll.u32 %s1649, 4
          %s1653 = int_to_ptr.hbm [resolvable:$true] %s1652
          %1658 = dma.vmem_to_hbm [thread:$0]  %s1651, 4096, %s1653, %s1637, 64, 64, 4
        $region52: #{tpu_custom_call.1} parent=31 // pred_fallthru
          _
      $region32: #{tpu_custom_call.1} parent=5 // pred_fallthru
        _
      %p1659 = scmp.le.s32.totalorder 2, %s16
      // Predicated region
      $region53: #{tpu_custom_call.1} parent=5 // pred_check
        %p1660 = pneg %p1659
      $region54: #{tpu_custom_call.1} parent=5 // pred_check_branch
        %1662 = sbr.rel (%p1660) target = $region56
      $region55: #{tpu_custom_call.1} parent=5 // pred_region
        %s1663 = ssub.s32 %s16, 2
        // Predicated region
        $region57: #{tpu_custom_call.1} parent=55 // pred_check
          %p1664 = pneg %p148
        $region58: #{tpu_custom_call.1} parent=55 // pred_check_branch
          %1666 = sbr.rel (%p1664) target = $region60
        $region59: #{tpu_custom_call.1} parent=55 // pred_region
          %s1667 = sand.u32 %s133, 1
          %s1668 = scalar_lea.sflag [#allocation5], %s1667
          %s1669 = sand.u32 %s133, 1
          %s1670 = smul.addr %s1669, 256
          %s1671 = scalar_lea.vmem [#allocation8], %s1670
          %1673 = dma.done %s1668, 4096
        $region60: #{tpu_custom_call.1} parent=55 // pred_fallthru
          _
      $region56: #{tpu_custom_call.1} parent=5 // pred_fallthru
        _
    $region6: #{tpu_custom_call.1} parent=1 // loop_footer
      %s20 = sadd.s32 1, %s16
    $region7: #{tpu_custom_call.1} parent=1 // loop_footer_branch
      %15 = sbr.rel target = $region3
    $region8: #{tpu_custom_call.1} parent=1 // loop_exit
      _
    %1674 = vsyncpa [#allocation4], 1
    %s1675 = scalar_lea.sflag [#allocation4], 1
    %1676 = vsyncpa %s1675, 1
    %1677 = vsyncpa [#allocation7], 1
    %1678 = vsyncpa [#allocation5], 1
    %s1679 = scalar_lea.sflag [#allocation5], 1
    %1680 = vsyncpa %s1679, 1

</llo_original>
